<compile_context>
chip_gen: v5e
topology: v5e:2x2
jax: 0.10.0
libtpu: 0.0.40
codegen_flags: <defaults>
</compile_context>

<pallas_src>
import math

import jax
import jax.numpy as jnp
from jax.experimental import pallas as pl
from jax.experimental.pallas import tpu as pltpu

# ---- model hyperparameters (small, consistent with the module) ----
B = 2          # batch
S = 16         # sequence length
D = 128        # d_model
H = 4          # num_heads
HD = D // H    # head dim (32)
DFF = 4 * D    # FFN hidden (512)
N = B * S      # merged rows (32)
EPS = 1e-5     # nn.LayerNorm default eps


def _layernorm(x, g, b):
    mu = jnp.mean(x, axis=-1, keepdims=True)
    xc = x - mu
    var = jnp.mean(xc * xc, axis=-1, keepdims=True)
    return xc * jax.lax.rsqrt(var + EPS) * g + b


def sab_kernel(x_ref, wqkv_ref, bqkv_ref, wo_ref, w1_hbm, b1_ref, w2_hbm, vec_ref,
               out_ref, w1_vmem, w2_vmem, dma_sem):
    # --- kick off the FFN-weight DMAs first so they overlap QKV + attention ---
    w1_cp = pltpu.make_async_copy(w1_hbm, w1_vmem, dma_sem.at[0])
    w2_cp = pltpu.make_async_copy(w2_hbm, w2_vmem, dma_sem.at[1])
    w1_cp.start()
    w2_cp.start()

    # x is the whole (B*S, D) activation slab — single grid step.
    x = x_ref[...]                                              # (N, D)

    # --- fused QKV projection: one MXU pass with 3D output lanes ---
    qkv = jnp.dot(x, wqkv_ref[...],
                  preferred_element_type=jnp.float32) + bqkv_ref[...]   # (N, 3D)
    # 128-lane-aligned slices (free), then split the sublane-major batch dim (cheap).
    q = qkv[:, 0 * D:1 * D].reshape(B, S, D)
    k = qkv[:, 1 * D:2 * D].reshape(B, S, D)
    v = qkv[:, 2 * D:3 * D].reshape(B, S, D)

    # stacked (1, D) vectors: [bo, g1, be1, b2, g2, be2]
    vecs = vec_ref[...]
    bo, g1, be1, b2, g2, be2 = (vecs[i:i + 1, :] for i in range(6))

    scale = 1.0 / math.sqrt(HD)
    # --- per-head attention, batched over B; contexts stay in registers ---
    head_ctx = []
    for h in range(H):
        cols = slice(h * HD, (h + 1) * HD)
        qh = q[:, :, cols]                                      # (B, S, HD)
        kh = k[:, :, cols]
        vh = v[:, :, cols]
        # K-transpose folded into the contraction (no explicit .T / XLU transpose).
        s = jnp.einsum('bqd,bkd->bqk', qh, kh,
                       preferred_element_type=jnp.float32) * scale       # (B, S, S)
        s = s - jnp.max(s, axis=-1, keepdims=True)
        p = jnp.exp(s)
        p = p * pl.reciprocal(jnp.sum(p, axis=-1, keepdims=True), approx=False)
        head_ctx.append(jnp.einsum('bqk,bkd->bqd', p, vh,
                                   preferred_element_type=jnp.float32))  # (B, S, HD)
    # lane-dense context: concat heads along lanes, merge batches along sublanes.
    ctx = jnp.concatenate(head_ctx, axis=-1).reshape(N, D)      # (N, D)

    attn = jnp.dot(ctx, wo_ref[...], preferred_element_type=jnp.float32) + bo

    # residual 1 + LayerNorm (dropout = identity in eval)
    y1 = _layernorm(x + attn, g1, be1)

    # --- FFN: weights arrive via the DMAs started at the top ---
    w1_cp.wait()
    w2_cp.wait()
    h1 = jnp.dot(y1, w1_vmem[...], preferred_element_type=jnp.float32) + b1_ref[...]
    h1 = jnp.maximum(h1, 0.0)
    ffn = jnp.dot(h1, w2_vmem[...], preferred_element_type=jnp.float32) + b2

    # residual 2 + LayerNorm
    out_ref[...] = _layernorm(y1 + ffn, g2, be2)


def make_params(key):
    ks = jax.random.split(key, 8)
    scale = 0.02
    # weights stored pre-transposed: y = x @ W + b  (PyTorch Linear stores (out, in))
    wq = scale * jax.random.normal(ks[0], (D, D), jnp.float32)
    wk = scale * jax.random.normal(ks[1], (D, D), jnp.float32)
    wv = scale * jax.random.normal(ks[2], (D, D), jnp.float32)
    wo = scale * jax.random.normal(ks[3], (D, D), jnp.float32)
    w1 = scale * jax.random.normal(ks[4], (D, DFF), jnp.float32)
    w2 = scale * jax.random.normal(ks[5], (DFF, D), jnp.float32)
    bq = 0.01 * jax.random.normal(ks[6], (1, D), jnp.float32)
    bk = jnp.zeros((1, D), jnp.float32)
    bv = 0.01 * jax.random.normal(ks[7], (1, D), jnp.float32)
    bo = jnp.zeros((1, D), jnp.float32)
    b1 = jnp.zeros((1, DFF), jnp.float32)
    b2 = jnp.zeros((1, D), jnp.float32)
    g1 = jnp.ones((1, D), jnp.float32)
    be1 = jnp.zeros((1, D), jnp.float32)
    g2 = jnp.ones((1, D), jnp.float32)
    be2 = jnp.zeros((1, D), jnp.float32)
    return dict(wq=wq, bq=bq, wk=wk, bk=bk, wv=wv, bv=bv, wo=wo, bo=bo,
                g1=g1, be1=be1, w1=w1, b1=b1, w2=w2, b2=b2, g2=g2, be2=be2)


def self_attention_block(x, p):
    # wrapper-side fusions (free layout plumbing in XLA):
    x2 = x.reshape(N, D)                                                  # merge batch
    wqkv = jnp.concatenate([p["wq"], p["wk"], p["wv"]], axis=1)           # (D, 3D)
    bqkv = jnp.concatenate([p["bq"], p["bk"], p["bv"]], axis=1)           # (1, 3D)
    vecs = jnp.concatenate([p["bo"], p["g1"], p["be1"],
                            p["b2"], p["g2"], p["be2"]], axis=0)          # (6, D)

    def full2d(shape):
        return pl.BlockSpec(shape, lambda i: (0, 0))

    out = pl.pallas_call(
        sab_kernel,
        out_shape=jax.ShapeDtypeStruct((N, D), jnp.float32),
        grid=(1,),                      # single step: all weights fetched/used once
        in_specs=[
            full2d((N, D)),                       # x (merged batch)
            full2d((D, 3 * D)),                   # fused wqkv
            full2d((1, 3 * D)),                   # fused bqkv
            full2d((D, D)),                       # wo
            pl.BlockSpec(memory_space=pl.ANY),    # w1: raw HBM ref, manual DMA
            full2d((1, DFF)),                     # b1
            pl.BlockSpec(memory_space=pl.ANY),    # w2: raw HBM ref, manual DMA
            full2d((6, D)),                       # stacked [bo, g1, be1, b2, g2, be2]
        ],
        out_specs=full2d((N, D)),
        scratch_shapes=[
            pltpu.VMEM((D, DFF), jnp.float32),    # w1 landing buffer
            pltpu.VMEM((DFF, D), jnp.float32),    # w2 landing buffer
            pltpu.SemaphoreType.DMA((2,)),        # one sem per FFN-weight DMA
        ],
        compiler_params=pltpu.CompilerParams(
            dimension_semantics=("arbitrary",)),
        cost_estimate=pl.CostEstimate(
            flops=12_800_000, transcendentals=2_048, bytes_accessed=850_000),
    )(x2, wqkv, bqkv, p["wo"], p["w1"], p["b1"], p["w2"], vecs)
    return out.reshape(B, S, D)


def ref_forward(x, p):
    # pure-JAX reference with identical semantics (eval-mode PyTorch block)
    def ln(y, g, b):
        mu = jnp.mean(y, axis=-1, keepdims=True)
        var = jnp.mean((y - mu) ** 2, axis=-1, keepdims=True)
        return (y - mu) / jnp.sqrt(var + EPS) * g + b

    q = x @ p["wq"] + p["bq"]
    k = x @ p["wk"] + p["bk"]
    v = x @ p["wv"] + p["bv"]
    qh = q.reshape(B, S, H, HD).transpose(0, 2, 1, 3)
    kh = k.reshape(B, S, H, HD).transpose(0, 2, 1, 3)
    vh = v.reshape(B, S, H, HD).transpose(0, 2, 1, 3)
    s = jnp.einsum("bhqd,bhkd->bhqk", qh, kh) / math.sqrt(HD)
    pmat = jax.nn.softmax(s, axis=-1)
    ctx = jnp.einsum("bhqk,bhkd->bhqd", pmat, vh).transpose(0, 2, 1, 3).reshape(B, S, D)
    attn = ctx @ p["wo"] + p["bo"]
    y1 = ln(x + attn, p["g1"], p["be1"])
    ffn = jnp.maximum(y1 @ p["w1"] + p["b1"], 0.0) @ p["w2"] + p["b2"]
    return ln(y1 + ffn, p["g2"], p["be2"])


if __name__ == "__main__":
    key = jax.random.PRNGKey(0)
    kx, kp = jax.random.split(key)
    x = jax.random.normal(kx, (B, S, D), jnp.float32)
    params = make_params(kp)

    out = jax.block_until_ready(self_attention_block(x, params))
    ref = ref_forward(x, params)

    assert out.shape == (B, S, D)
    err = float(jnp.max(jnp.abs(out - ref)))
    assert jnp.allclose(out, ref, atol=2e-4, rtol=2e-4), err
    print("KERNEL_OK")
</pallas_src>

<mosaic_0001>
module attributes {stable_mosaic.version = 11 : i64} {
  func.func @sab_kernel(%arg0: i32, %arg1: memref<32x128xf32, #tpu.memory_space<vmem>>, %arg2: memref<128x384xf32, #tpu.memory_space<vmem>>, %arg3: memref<1x384xf32, #tpu.memory_space<vmem>>, %arg4: memref<128x128xf32, #tpu.memory_space<vmem>>, %arg5: memref<128x512xf32, #tpu.memory_space<any>>, %arg6: memref<1x512xf32, #tpu.memory_space<vmem>>, %arg7: memref<512x128xf32, #tpu.memory_space<any>>, %arg8: memref<6x128xf32, #tpu.memory_space<vmem>>, %arg9: memref<32x128xf32, #tpu.memory_space<vmem>>, %arg10: memref<128x512xf32, #tpu.memory_space<vmem>>, %arg11: memref<512x128xf32, #tpu.memory_space<vmem>>, %arg12: memref<2x!tpu.dma_semaphore, #tpu.memory_space<semaphore_mem>>) attributes {dimension_semantics = [#tpu.dimension_semantics<arbitrary>], iteration_bounds = array<i64: 1>, scalar_prefetch = 0 : i64, scratch_operands = 3 : i64, tpu.core_type = #tpu.core_type<tc>, window_params = [{pipeline_mode = #tpu.pipeline_mode<synchronous>, transform_indices = @transform_0, window_bounds = array<i64: 32, 128>}, {pipeline_mode = #tpu.pipeline_mode<synchronous>, transform_indices = @transform_1, window_bounds = array<i64: 128, 384>}, {pipeline_mode = #tpu.pipeline_mode<synchronous>, transform_indices = @transform_2, window_bounds = array<i64: 1, 384>}, {pipeline_mode = #tpu.pipeline_mode<synchronous>, transform_indices = @transform_3, window_bounds = array<i64: 128, 128>}, {}, {pipeline_mode = #tpu.pipeline_mode<synchronous>, transform_indices = @transform_5, window_bounds = array<i64: 1, 512>}, {}, {pipeline_mode = #tpu.pipeline_mode<synchronous>, transform_indices = @transform_7, window_bounds = array<i64: 6, 128>}, {pipeline_mode = #tpu.pipeline_mode<synchronous>, transform_indices = @transform_8, window_bounds = array<i64: 32, 128>}]} {
    %c0_i32 = arith.constant 0 : i32
    %0 = tpu.memref_slice %arg12[%c0_i32] : memref<2x!tpu.dma_semaphore, #tpu.memory_space<semaphore_mem>> -> memref<1x!tpu.dma_semaphore, #tpu.memory_space<semaphore_mem>>
    %1 = tpu.memref_squeeze %0 : memref<1x!tpu.dma_semaphore, #tpu.memory_space<semaphore_mem>> -> memref<!tpu.dma_semaphore, #tpu.memory_space<semaphore_mem>>
    tpu.enqueue_dma source(%arg5 : memref<128x512xf32, #tpu.memory_space<any>>) target(%arg10 : memref<128x512xf32, #tpu.memory_space<vmem>>) target_semaphore(%1 : memref<!tpu.dma_semaphore, #tpu.memory_space<semaphore_mem>>)
    %c1_i32 = arith.constant 1 : i32
    %2 = tpu.memref_slice %arg12[%c1_i32] : memref<2x!tpu.dma_semaphore, #tpu.memory_space<semaphore_mem>> -> memref<1x!tpu.dma_semaphore, #tpu.memory_space<semaphore_mem>>
    %3 = tpu.memref_squeeze %2 : memref<1x!tpu.dma_semaphore, #tpu.memory_space<semaphore_mem>> -> memref<!tpu.dma_semaphore, #tpu.memory_space<semaphore_mem>>
    tpu.enqueue_dma source(%arg7 : memref<512x128xf32, #tpu.memory_space<any>>) target(%arg11 : memref<512x128xf32, #tpu.memory_space<vmem>>) target_semaphore(%3 : memref<!tpu.dma_semaphore, #tpu.memory_space<semaphore_mem>>)
    %c0 = arith.constant 0 : index
    %c0_0 = arith.constant 0 : index
    %4 = vector.load %arg1[%c0, %c0_0] : memref<32x128xf32, #tpu.memory_space<vmem>>, vector<32x128xf32>
    %c0_1 = arith.constant 0 : index
    %c0_2 = arith.constant 0 : index
    %5 = vector.load %arg2[%c0_1, %c0_2] : memref<128x384xf32, #tpu.memory_space<vmem>>, vector<128x384xf32>
    %cst = arith.constant dense<0.000000e+00> : vector<32x384xf32>
    %6 = tpu.matmul %4, %5, %cst {dimension_numbers = #tpu.dot_dimension_numbers<[1], [0], [0], [1], [0, 0, 1, 1], [], []>} : vector<32x128xf32>, vector<128x384xf32>, vector<32x384xf32> -> vector<32x384xf32>
    %c0_3 = arith.constant 0 : index
    %c0_4 = arith.constant 0 : index
    %7 = vector.load %arg3[%c0_3, %c0_4] : memref<1x384xf32, #tpu.memory_space<vmem>>, vector<1x384xf32>
    %8 = vector.broadcast %7 : vector<1x384xf32> to vector<32x384xf32>
    %9 = arith.addf %6, %8 : vector<32x384xf32>
    %10 = vector.extract_strided_slice %9 {offsets = [0, 0], sizes = [32, 128], strides = [1, 1]} : vector<32x384xf32> to vector<32x128xf32>
    %11 = vector.shape_cast %10 : vector<32x128xf32> to vector<2x16x128xf32>
    %12 = vector.extract_strided_slice %9 {offsets = [0, 128], sizes = [32, 128], strides = [1, 1]} : vector<32x384xf32> to vector<32x128xf32>
    %13 = vector.shape_cast %12 : vector<32x128xf32> to vector<2x16x128xf32>
    %14 = vector.extract_strided_slice %9 {offsets = [0, 256], sizes = [32, 128], strides = [1, 1]} : vector<32x384xf32> to vector<32x128xf32>
    %15 = vector.shape_cast %14 : vector<32x128xf32> to vector<2x16x128xf32>
    %c0_5 = arith.constant 0 : index
    %c0_6 = arith.constant 0 : index
    %16 = vector.load %arg8[%c0_5, %c0_6] : memref<6x128xf32, #tpu.memory_space<vmem>>, vector<6x128xf32>
    %17 = vector.extract_strided_slice %16 {offsets = [0, 0], sizes = [1, 128], strides = [1, 1]} : vector<6x128xf32> to vector<1x128xf32>
    %18 = vector.extract_strided_slice %16 {offsets = [1, 0], sizes = [1, 128], strides = [1, 1]} : vector<6x128xf32> to vector<1x128xf32>
    %19 = vector.extract_strided_slice %16 {offsets = [2, 0], sizes = [1, 128], strides = [1, 1]} : vector<6x128xf32> to vector<1x128xf32>
    %20 = vector.extract_strided_slice %16 {offsets = [3, 0], sizes = [1, 128], strides = [1, 1]} : vector<6x128xf32> to vector<1x128xf32>
    %21 = vector.extract_strided_slice %16 {offsets = [4, 0], sizes = [1, 128], strides = [1, 1]} : vector<6x128xf32> to vector<1x128xf32>
    %22 = vector.extract_strided_slice %16 {offsets = [5, 0], sizes = [1, 128], strides = [1, 1]} : vector<6x128xf32> to vector<1x128xf32>
    %23 = vector.extract_strided_slice %11 {offsets = [0, 0, 0], sizes = [2, 16, 32], strides = [1, 1, 1]} : vector<2x16x128xf32> to vector<2x16x32xf32>
    %24 = vector.extract_strided_slice %13 {offsets = [0, 0, 0], sizes = [2, 16, 32], strides = [1, 1, 1]} : vector<2x16x128xf32> to vector<2x16x32xf32>
    %25 = vector.extract_strided_slice %15 {offsets = [0, 0, 0], sizes = [2, 16, 32], strides = [1, 1, 1]} : vector<2x16x128xf32> to vector<2x16x32xf32>
    "tpu.trace_start"() <{level = 10 : i32, message = "bqd,bkd->bqk"}> : () -> ()
    %cst_7 = arith.constant dense<0.000000e+00> : vector<2x16x16xf32>
    %26 = tpu.matmul %23, %24, %cst_7 {dimension_numbers = #tpu.dot_dimension_numbers<[2], [2], [1], [1], [0, 0, 0, 1, 1, 1], [0], [0]>} : vector<2x16x32xf32>, vector<2x16x32xf32>, vector<2x16x16xf32> -> vector<2x16x16xf32>
    "tpu.trace_stop"() : () -> ()
    %cst_8 = arith.constant 0.176776692 : f32
    %27 = vector.broadcast %cst_8 : f32 to vector<2x16x16xf32>
    %28 = arith.mulf %26, %27 : vector<2x16x16xf32>
    %cst_9 = arith.constant dense<0xFF800000> : vector<2x16xf32>
    %29 = vector.multi_reduction <maximumf>, %28, %cst_9 [2] : vector<2x16x16xf32> to vector<2x16xf32>
    %30 = vector.shape_cast %29 : vector<2x16xf32> to vector<2x16x1xf32>
    %31 = vector.broadcast %30 : vector<2x16x1xf32> to vector<2x16x16xf32>
    %32 = arith.subf %28, %31 : vector<2x16x16xf32>
    %33 = math.exp %32 : vector<2x16x16xf32>
    %cst_10 = arith.constant dense<0.000000e+00> : vector<2x16xf32>
    %34 = vector.multi_reduction <add>, %33, %cst_10 [2] : vector<2x16x16xf32> to vector<2x16xf32>
    %35 = vector.shape_cast %34 : vector<2x16xf32> to vector<2x16x1xf32>
    %36 = tpu.reciprocal %35 : vector<2x16x1xf32> -> vector<2x16x1xf32>
    %37 = vector.broadcast %36 : vector<2x16x1xf32> to vector<2x16x16xf32>
    %38 = arith.mulf %33, %37 : vector<2x16x16xf32>
    "tpu.trace_start"() <{level = 10 : i32, message = "bqk,bkd->bqd"}> : () -> ()
    %cst_11 = arith.constant dense<0.000000e+00> : vector<2x16x32xf32>
    %39 = tpu.matmul %38, %25, %cst_11 {dimension_numbers = #tpu.dot_dimension_numbers<[2], [1], [1], [2], [0, 0, 0, 1, 1, 2], [0], [0]>} : vector<2x16x16xf32>, vector<2x16x32xf32>, vector<2x16x32xf32> -> vector<2x16x32xf32>
    "tpu.trace_stop"() : () -> ()
    %40 = vector.extract_strided_slice %11 {offsets = [0, 0, 32], sizes = [2, 16, 32], strides = [1, 1, 1]} : vector<2x16x128xf32> to vector<2x16x32xf32>
    %41 = vector.extract_strided_slice %13 {offsets = [0, 0, 32], sizes = [2, 16, 32], strides = [1, 1, 1]} : vector<2x16x128xf32> to vector<2x16x32xf32>
    %42 = vector.extract_strided_slice %15 {offsets = [0, 0, 32], sizes = [2, 16, 32], strides = [1, 1, 1]} : vector<2x16x128xf32> to vector<2x16x32xf32>
    "tpu.trace_start"() <{level = 10 : i32, message = "bqd,bkd->bqk"}> : () -> ()
    %cst_12 = arith.constant dense<0.000000e+00> : vector<2x16x16xf32>
    %43 = tpu.matmul %40, %41, %cst_12 {dimension_numbers = #tpu.dot_dimension_numbers<[2], [2], [1], [1], [0, 0, 0, 1, 1, 1], [0], [0]>} : vector<2x16x32xf32>, vector<2x16x32xf32>, vector<2x16x16xf32> -> vector<2x16x16xf32>
    "tpu.trace_stop"() : () -> ()
    %cst_13 = arith.constant 0.176776692 : f32
    %44 = vector.broadcast %cst_13 : f32 to vector<2x16x16xf32>
    %45 = arith.mulf %43, %44 : vector<2x16x16xf32>
    %cst_14 = arith.constant dense<0xFF800000> : vector<2x16xf32>
    %46 = vector.multi_reduction <maximumf>, %45, %cst_14 [2] : vector<2x16x16xf32> to vector<2x16xf32>
    %47 = vector.shape_cast %46 : vector<2x16xf32> to vector<2x16x1xf32>
    %48 = vector.broadcast %47 : vector<2x16x1xf32> to vector<2x16x16xf32>
    %49 = arith.subf %45, %48 : vector<2x16x16xf32>
    %50 = math.exp %49 : vector<2x16x16xf32>
    %cst_15 = arith.constant dense<0.000000e+00> : vector<2x16xf32>
    %51 = vector.multi_reduction <add>, %50, %cst_15 [2] : vector<2x16x16xf32> to vector<2x16xf32>
    %52 = vector.shape_cast %51 : vector<2x16xf32> to vector<2x16x1xf32>
    %53 = tpu.reciprocal %52 : vector<2x16x1xf32> -> vector<2x16x1xf32>
    %54 = vector.broadcast %53 : vector<2x16x1xf32> to vector<2x16x16xf32>
    %55 = arith.mulf %50, %54 : vector<2x16x16xf32>
    "tpu.trace_start"() <{level = 10 : i32, message = "bqk,bkd->bqd"}> : () -> ()
    %cst_16 = arith.constant dense<0.000000e+00> : vector<2x16x32xf32>
    %56 = tpu.matmul %55, %42, %cst_16 {dimension_numbers = #tpu.dot_dimension_numbers<[2], [1], [1], [2], [0, 0, 0, 1, 1, 2], [0], [0]>} : vector<2x16x16xf32>, vector<2x16x32xf32>, vector<2x16x32xf32> -> vector<2x16x32xf32>
    "tpu.trace_stop"() : () -> ()
    %57 = vector.extract_strided_slice %11 {offsets = [0, 0, 64], sizes = [2, 16, 32], strides = [1, 1, 1]} : vector<2x16x128xf32> to vector<2x16x32xf32>
    %58 = vector.extract_strided_slice %13 {offsets = [0, 0, 64], sizes = [2, 16, 32], strides = [1, 1, 1]} : vector<2x16x128xf32> to vector<2x16x32xf32>
    %59 = vector.extract_strided_slice %15 {offsets = [0, 0, 64], sizes = [2, 16, 32], strides = [1, 1, 1]} : vector<2x16x128xf32> to vector<2x16x32xf32>
    "tpu.trace_start"() <{level = 10 : i32, message = "bqd,bkd->bqk"}> : () -> ()
    %cst_17 = arith.constant dense<0.000000e+00> : vector<2x16x16xf32>
    %60 = tpu.matmul %57, %58, %cst_17 {dimension_numbers = #tpu.dot_dimension_numbers<[2], [2], [1], [1], [0, 0, 0, 1, 1, 1], [0], [0]>} : vector<2x16x32xf32>, vector<2x16x32xf32>, vector<2x16x16xf32> -> vector<2x16x16xf32>
    "tpu.trace_stop"() : () -> ()
    %cst_18 = arith.constant 0.176776692 : f32
    %61 = vector.broadcast %cst_18 : f32 to vector<2x16x16xf32>
    %62 = arith.mulf %60, %61 : vector<2x16x16xf32>
    %cst_19 = arith.constant dense<0xFF800000> : vector<2x16xf32>
    %63 = vector.multi_reduction <maximumf>, %62, %cst_19 [2] : vector<2x16x16xf32> to vector<2x16xf32>
    %64 = vector.shape_cast %63 : vector<2x16xf32> to vector<2x16x1xf32>
    %65 = vector.broadcast %64 : vector<2x16x1xf32> to vector<2x16x16xf32>
    %66 = arith.subf %62, %65 : vector<2x16x16xf32>
    %67 = math.exp %66 : vector<2x16x16xf32>
    %cst_20 = arith.constant dense<0.000000e+00> : vector<2x16xf32>
    %68 = vector.multi_reduction <add>, %67, %cst_20 [2] : vector<2x16x16xf32> to vector<2x16xf32>
    %69 = vector.shape_cast %68 : vector<2x16xf32> to vector<2x16x1xf32>
    %70 = tpu.reciprocal %69 : vector<2x16x1xf32> -> vector<2x16x1xf32>
    %71 = vector.broadcast %70 : vector<2x16x1xf32> to vector<2x16x16xf32>
    %72 = arith.mulf %67, %71 : vector<2x16x16xf32>
    "tpu.trace_start"() <{level = 10 : i32, message = "bqk,bkd->bqd"}> : () -> ()
    %cst_21 = arith.constant dense<0.000000e+00> : vector<2x16x32xf32>
    %73 = tpu.matmul %72, %59, %cst_21 {dimension_numbers = #tpu.dot_dimension_numbers<[2], [1], [1], [2], [0, 0, 0, 1, 1, 2], [0], [0]>} : vector<2x16x16xf32>, vector<2x16x32xf32>, vector<2x16x32xf32> -> vector<2x16x32xf32>
    "tpu.trace_stop"() : () -> ()
    %74 = vector.extract_strided_slice %11 {offsets = [0, 0, 96], sizes = [2, 16, 32], strides = [1, 1, 1]} : vector<2x16x128xf32> to vector<2x16x32xf32>
    %75 = vector.extract_strided_slice %13 {offsets = [0, 0, 96], sizes = [2, 16, 32], strides = [1, 1, 1]} : vector<2x16x128xf32> to vector<2x16x32xf32>
    %76 = vector.extract_strided_slice %15 {offsets = [0, 0, 96], sizes = [2, 16, 32], strides = [1, 1, 1]} : vector<2x16x128xf32> to vector<2x16x32xf32>
    "tpu.trace_start"() <{level = 10 : i32, message = "bqd,bkd->bqk"}> : () -> ()
    %cst_22 = arith.constant dense<0.000000e+00> : vector<2x16x16xf32>
    %77 = tpu.matmul %74, %75, %cst_22 {dimension_numbers = #tpu.dot_dimension_numbers<[2], [2], [1], [1], [0, 0, 0, 1, 1, 1], [0], [0]>} : vector<2x16x32xf32>, vector<2x16x32xf32>, vector<2x16x16xf32> -> vector<2x16x16xf32>
    "tpu.trace_stop"() : () -> ()
    %cst_23 = arith.constant 0.176776692 : f32
    %78 = vector.broadcast %cst_23 : f32 to vector<2x16x16xf32>
    %79 = arith.mulf %77, %78 : vector<2x16x16xf32>
    %cst_24 = arith.constant dense<0xFF800000> : vector<2x16xf32>
    %80 = vector.multi_reduction <maximumf>, %79, %cst_24 [2] : vector<2x16x16xf32> to vector<2x16xf32>
    %81 = vector.shape_cast %80 : vector<2x16xf32> to vector<2x16x1xf32>
    %82 = vector.broadcast %81 : vector<2x16x1xf32> to vector<2x16x16xf32>
    %83 = arith.subf %79, %82 : vector<2x16x16xf32>
    %84 = math.exp %83 : vector<2x16x16xf32>
    %cst_25 = arith.constant dense<0.000000e+00> : vector<2x16xf32>
    %85 = vector.multi_reduction <add>, %84, %cst_25 [2] : vector<2x16x16xf32> to vector<2x16xf32>
    %86 = vector.shape_cast %85 : vector<2x16xf32> to vector<2x16x1xf32>
    %87 = tpu.reciprocal %86 : vector<2x16x1xf32> -> vector<2x16x1xf32>
    %88 = vector.broadcast %87 : vector<2x16x1xf32> to vector<2x16x16xf32>
    %89 = arith.mulf %84, %88 : vector<2x16x16xf32>
    "tpu.trace_start"() <{level = 10 : i32, message = "bqk,bkd->bqd"}> : () -> ()
    %cst_26 = arith.constant dense<0.000000e+00> : vector<2x16x32xf32>
    %90 = tpu.matmul %89, %76, %cst_26 {dimension_numbers = #tpu.dot_dimension_numbers<[2], [1], [1], [2], [0, 0, 0, 1, 1, 2], [0], [0]>} : vector<2x16x16xf32>, vector<2x16x32xf32>, vector<2x16x32xf32> -> vector<2x16x32xf32>
    "tpu.trace_stop"() : () -> ()
    %91 = tpu.concatenate %39, %56, %73, %90 in 2 : vector<2x16x32xf32>, vector<2x16x32xf32>, vector<2x16x32xf32>, vector<2x16x32xf32> -> vector<2x16x128xf32>
    %92 = vector.shape_cast %91 : vector<2x16x128xf32> to vector<32x128xf32>
    %c0_27 = arith.constant 0 : index
    %c0_28 = arith.constant 0 : index
    %93 = vector.load %arg4[%c0_27, %c0_28] : memref<128x128xf32, #tpu.memory_space<vmem>>, vector<128x128xf32>
    %cst_29 = arith.constant dense<0.000000e+00> : vector<32x128xf32>
    %94 = tpu.matmul %92, %93, %cst_29 {dimension_numbers = #tpu.dot_dimension_numbers<[1], [0], [0], [1], [0, 0, 1, 1], [], []>} : vector<32x128xf32>, vector<128x128xf32>, vector<32x128xf32> -> vector<32x128xf32>
    %95 = vector.broadcast %17 : vector<1x128xf32> to vector<32x128xf32>
    %96 = arith.addf %94, %95 : vector<32x128xf32>
    %97 = arith.addf %4, %96 : vector<32x128xf32>
    %cst_30 = arith.constant dense<0.000000e+00> : vector<32xf32>
    %98 = vector.multi_reduction <add>, %97, %cst_30 [1] : vector<32x128xf32> to vector<32xf32>
    %99 = vector.shape_cast %98 : vector<32xf32> to vector<32x1xf32>
    %cst_31 = arith.constant 1.280000e+02 : f32
    %100 = vector.broadcast %cst_31 : f32 to vector<32x1xf32>
    %101 = arith.divf %99, %100 : vector<32x1xf32>
    %102 = vector.broadcast %101 : vector<32x1xf32> to vector<32x128xf32>
    %103 = arith.subf %97, %102 : vector<32x128xf32>
    %104 = arith.mulf %103, %103 : vector<32x128xf32>
    %cst_32 = arith.constant dense<0.000000e+00> : vector<32xf32>
    %105 = vector.multi_reduction <add>, %104, %cst_32 [1] : vector<32x128xf32> to vector<32xf32>
    %106 = vector.shape_cast %105 : vector<32xf32> to vector<32x1xf32>
    %cst_33 = arith.constant 1.280000e+02 : f32
    %107 = vector.broadcast %cst_33 : f32 to vector<32x1xf32>
    %108 = arith.divf %106, %107 : vector<32x1xf32>
    %cst_34 = arith.constant 9.99999974E-6 : f32
    %109 = vector.broadcast %cst_34 : f32 to vector<32x1xf32>
    %110 = arith.addf %108, %109 : vector<32x1xf32>
    %111 = math.rsqrt %110 : vector<32x1xf32>
    %112 = vector.broadcast %111 : vector<32x1xf32> to vector<32x128xf32>
    %113 = arith.mulf %103, %112 : vector<32x128xf32>
    %114 = vector.broadcast %18 : vector<1x128xf32> to vector<32x128xf32>
    %115 = arith.mulf %113, %114 : vector<32x128xf32>
    %116 = vector.broadcast %19 : vector<1x128xf32> to vector<32x128xf32>
    %117 = arith.addf %115, %116 : vector<32x128xf32>
    %c0_i32_35 = arith.constant 0 : i32
    %118 = tpu.memref_slice %arg12[%c0_i32_35] : memref<2x!tpu.dma_semaphore, #tpu.memory_space<semaphore_mem>> -> memref<1x!tpu.dma_semaphore, #tpu.memory_space<semaphore_mem>>
    %119 = tpu.memref_squeeze %118 : memref<1x!tpu.dma_semaphore, #tpu.memory_space<semaphore_mem>> -> memref<!tpu.dma_semaphore, #tpu.memory_space<semaphore_mem>>
    tpu.wait_dma2 semaphore(%119 : memref<!tpu.dma_semaphore, #tpu.memory_space<semaphore_mem>>) src(%arg5 : memref<128x512xf32, #tpu.memory_space<any>>) dst(%arg10 : memref<128x512xf32, #tpu.memory_space<vmem>>)
    %c1_i32_36 = arith.constant 1 : i32
    %120 = tpu.memref_slice %arg12[%c1_i32_36] : memref<2x!tpu.dma_semaphore, #tpu.memory_space<semaphore_mem>> -> memref<1x!tpu.dma_semaphore, #tpu.memory_space<semaphore_mem>>
    %121 = tpu.memref_squeeze %120 : memref<1x!tpu.dma_semaphore, #tpu.memory_space<semaphore_mem>> -> memref<!tpu.dma_semaphore, #tpu.memory_space<semaphore_mem>>
    tpu.wait_dma2 semaphore(%121 : memref<!tpu.dma_semaphore, #tpu.memory_space<semaphore_mem>>) src(%arg7 : memref<512x128xf32, #tpu.memory_space<any>>) dst(%arg11 : memref<512x128xf32, #tpu.memory_space<vmem>>)
    %c0_37 = arith.constant 0 : index
    %c0_38 = arith.constant 0 : index
    %122 = vector.load %arg10[%c0_37, %c0_38] : memref<128x512xf32, #tpu.memory_space<vmem>>, vector<128x512xf32>
    %cst_39 = arith.constant dense<0.000000e+00> : vector<32x512xf32>
    %123 = tpu.matmul %117, %122, %cst_39 {dimension_numbers = #tpu.dot_dimension_numbers<[1], [0], [0], [1], [0, 0, 1, 1], [], []>} : vector<32x128xf32>, vector<128x512xf32>, vector<32x512xf32> -> vector<32x512xf32>
    %c0_40 = arith.constant 0 : index
    %c0_41 = arith.constant 0 : index
    %124 = vector.load %arg6[%c0_40, %c0_41] : memref<1x512xf32, #tpu.memory_space<vmem>>, vector<1x512xf32>
    %125 = vector.broadcast %124 : vector<1x512xf32> to vector<32x512xf32>
    %126 = arith.addf %123, %125 : vector<32x512xf32>
    %cst_42 = arith.constant 0.000000e+00 : f32
    %127 = vector.broadcast %cst_42 : f32 to vector<32x512xf32>
    %128 = arith.maximumf %126, %127 : vector<32x512xf32>
    %c0_43 = arith.constant 0 : index
    %c0_44 = arith.constant 0 : index
    %129 = vector.load %arg11[%c0_43, %c0_44] : memref<512x128xf32, #tpu.memory_space<vmem>>, vector<512x128xf32>
    %cst_45 = arith.constant dense<0.000000e+00> : vector<32x128xf32>
    %130 = tpu.matmul %128, %129, %cst_45 {dimension_numbers = #tpu.dot_dimension_numbers<[1], [0], [0], [1], [0, 0, 1, 1], [], []>} : vector<32x512xf32>, vector<512x128xf32>, vector<32x128xf32> -> vector<32x128xf32>
    %131 = vector.broadcast %20 : vector<1x128xf32> to vector<32x128xf32>
    %132 = arith.addf %130, %131 : vector<32x128xf32>
    %133 = arith.addf %117, %132 : vector<32x128xf32>
    %cst_46 = arith.constant dense<0.000000e+00> : vector<32xf32>
    %134 = vector.multi_reduction <add>, %133, %cst_46 [1] : vector<32x128xf32> to vector<32xf32>
    %135 = vector.shape_cast %134 : vector<32xf32> to vector<32x1xf32>
    %cst_47 = arith.constant 1.280000e+02 : f32
    %136 = vector.broadcast %cst_47 : f32 to vector<32x1xf32>
    %137 = arith.divf %135, %136 : vector<32x1xf32>
    %138 = vector.broadcast %137 : vector<32x1xf32> to vector<32x128xf32>
    %139 = arith.subf %133, %138 : vector<32x128xf32>
    %140 = arith.mulf %139, %139 : vector<32x128xf32>
    %cst_48 = arith.constant dense<0.000000e+00> : vector<32xf32>
    %141 = vector.multi_reduction <add>, %140, %cst_48 [1] : vector<32x128xf32> to vector<32xf32>
    %142 = vector.shape_cast %141 : vector<32xf32> to vector<32x1xf32>
    %cst_49 = arith.constant 1.280000e+02 : f32
    %143 = vector.broadcast %cst_49 : f32 to vector<32x1xf32>
    %144 = arith.divf %142, %143 : vector<32x1xf32>
    %cst_50 = arith.constant 9.99999974E-6 : f32
    %145 = vector.broadcast %cst_50 : f32 to vector<32x1xf32>
    %146 = arith.addf %144, %145 : vector<32x1xf32>
    %147 = math.rsqrt %146 : vector<32x1xf32>
    %148 = vector.broadcast %147 : vector<32x1xf32> to vector<32x128xf32>
    %149 = arith.mulf %139, %148 : vector<32x128xf32>
    %150 = vector.broadcast %21 : vector<1x128xf32> to vector<32x128xf32>
    %151 = arith.mulf %149, %150 : vector<32x128xf32>
    %152 = vector.broadcast %22 : vector<1x128xf32> to vector<32x128xf32>
    %153 = arith.addf %151, %152 : vector<32x128xf32>
    %c0_51 = arith.constant 0 : index
    %c0_52 = arith.constant 0 : index
    %154 = vector.load %arg9[%c0_51, %c0_52] : memref<32x128xf32, #tpu.memory_space<vmem>>, vector<32x128xf32>
    tpu.vector_store %arg9[%c0_51, %c0_52], %153 {strides = array<i32>} : memref<32x128xf32, #tpu.memory_space<vmem>>, vector<32x128xf32>,
    return
  }
  func.func @transform_0(%arg0: i32) -> (i32, i32) {
    %c0_i32 = arith.constant 0 : i32
    %c0_i32_0 = arith.constant 0 : i32
    %c0_i32_1 = arith.constant 0 : i32
    return %c0_i32, %c0_i32_0 : i32, i32
  }
  func.func @transform_1(%arg0: i32) -> (i32, i32) {
    %c0_i32 = arith.constant 0 : i32
    %c0_i32_0 = arith.constant 0 : i32
    %c0_i32_1 = arith.constant 0 : i32
    return %c0_i32, %c0_i32_0 : i32, i32
  }
  func.func @transform_2(%arg0: i32) -> (i32, i32) {
    %c0_i32 = arith.constant 0 : i32
    %c0_i32_0 = arith.constant 0 : i32
    %c0_i32_1 = arith.constant 0 : i32
    return %c0_i32, %c0_i32_0 : i32, i32
  }
  func.func @transform_3(%arg0: i32) -> (i32, i32) {
    %c0_i32 = arith.constant 0 : i32
    %c0_i32_0 = arith.constant 0 : i32
    %c0_i32_1 = arith.constant 0 : i32
    return %c0_i32, %c0_i32_0 : i32, i32
  }
  func.func @transform_5(%arg0: i32) -> (i32, i32) {
    %c0_i32 = arith.constant 0 : i32
    %c0_i32_0 = arith.constant 0 : i32
    %c0_i32_1 = arith.constant 0 : i32
    return %c0_i32, %c0_i32_0 : i32, i32
  }
  func.func @transform_7(%arg0: i32) -> (i32, i32) {
    %c0_i32 = arith.constant 0 : i32
    %c0_i32_0 = arith.constant 0 : i32
    %c0_i32_1 = arith.constant 0 : i32
    return %c0_i32, %c0_i32_0 : i32, i32
  }
  func.func @transform_8(%arg0: i32) -> (i32, i32) {
    %c0_i32 = arith.constant 0 : i32
    %c0_i32_0 = arith.constant 0 : i32
    %c0_i32_1 = arith.constant 0 : i32
    return %c0_i32, %c0_i32_0 : i32, i32
  }
}

</mosaic_0001>

<llo_original>
// kernel: tpu_custom_call.1
$region0: #{tpu_custom_call.1}
  #allocation0 [shape = 'u32[]', space=smem, size = 0x4, offset = 0x4, fixed_abs, tag = 'smem constant byte address 0x4 - core index']
  #allocation1 [shape = 'u32[72,128]{1,0:T(1,128)}', space=vmem, size = 0x9000, scoped, tag = 'internal scratch']
  #allocation2 [shape = 'f32[128,512]{1,0:T(8,128)}', space=vmem, size = 0x40000, scoped, tag = 'scratch operand']
  #allocation3 [shape = 'f32[512,128]{1,0:T(8,128)}', space=vmem, size = 0x40000, scoped, tag = 'scratch operand']
  #allocation4 [shape = 's32[2]{0}', space=sflag, size = 0x8, scoped, tag = 'scratch operand']
  #allocation15 [shape = 's32[]', space=sflag, size = 0x4, offset = 0, fixed_abs, tag = 'sflag constant byte address 0x0 - dummy sync flag']
  #allocation16 [shape = 's32[]', space=sflag, size = 0x4, offset = 0, fixed_abs, tag = 'sflag constant byte address 0x0 - dummy sync flag']
  #allocation17 [shape = 'u32[]', space=smem, size = 0x4, offset = 0x44, fixed_abs, tag = 'smem constant byte address 0x44 - assertion arg 0']
  #allocation18 [shape = 'u32[]', space=smem, size = 0x4, offset = 0x48, fixed_abs, tag = 'smem constant byte address 0x48 - assertion arg 1']
  #allocation19 [shape = 's32[]', space=sflag, size = 0x4, offset = 0, fixed_abs, tag = 'sflag constant byte address 0x0 - dummy sync flag']
  #allocation20 [shape = 's32[]', space=sflag, size = 0x4, offset = 0, fixed_abs, tag = 'sflag constant byte address 0x0 - dummy sync flag']
  %s0 = inlined_call_operand.hbm [shape: f32[32,128], index: 0, kind: input, shape index: {}]
  %s1 = inlined_call_operand.hbm [shape: f32[128,384], index: 1, kind: input, shape index: {}]
  %s2 = inlined_call_operand.hbm [shape: f32[1,384], index: 2, kind: input, shape index: {}]
  %s3 = inlined_call_operand.hbm [shape: f32[128,128], index: 3, kind: input, shape index: {}]
  %s4 = inlined_call_operand.hbm [shape: f32[128,512], index: 4, kind: input, shape index: {}]
  %s5 = inlined_call_operand.vmem [shape: f32[1,512], index: 5, kind: input, shape index: {}]
  %s6 = inlined_call_operand.hbm [shape: f32[512,128], index: 6, kind: input, shape index: {}]
  %s7 = inlined_call_operand.hbm [shape: f32[6,128], index: 7, kind: input, shape index: {}]
  %s8 = inlined_call_operand.hbm [shape: f32[32,128], index: 8, kind: output, shape index: {}]
  %s9 = sld [smem:[#allocation0]]
  $region62: #{tpu_custom_call.1} parent=0
    _
  %s11 = ssub.s32 1, %s9
  %s12 = scalar_select 0, %s11, %s9
  $region1: #{tpu_custom_call.1} parent=0
    #allocation5 [shape = 'u8[16384]{0}', space=vmem, size = 0x4000, scoped, tag = 'input window, operand 0, single buffered']
    #allocation6 [shape = 's32[1]{0}', space=sflag, size = 0x4, scoped, tag = 'scoped memory for tpu_custom_call.1']
    #allocation7 [shape = 's32[1]{0}', space=sflag, size = 0x4, scoped, tag = 'scoped memory for tpu_custom_call.1']
    #allocation8 [shape = 'u8[196608]{0}', space=vmem, size = 0x30000, scoped, tag = 'input window, operand 1, single buffered']
    #allocation9 [shape = 's32[1]{0}', space=sflag, size = 0x4, scoped, tag = 'scoped memory for tpu_custom_call.1']
    #allocation10 [shape = 'u8[1536]{0}', space=vmem, size = 0x800, scoped, tag = 'input window, operand 2, single buffered']
    #allocation11 [shape = 'u8[65536]{0}', space=vmem, size = 0x10000, scoped, tag = 'input window, operand 3, single buffered']
    #allocation12 [shape = 's32[1]{0}', space=sflag, size = 0x4, scoped, tag = 'scoped memory for tpu_custom_call.1']
    #allocation13 [shape = 'u8[4096]{0}', space=vmem, size = 0x1000, scoped, tag = 'input window, operand 7, single buffered']
    #allocation14 [shape = 'u8[16384]{0}', space=vmem, size = 0x4000, scoped, tag = 'output window, operand 0, single buffered']
    %13 = vsyncpa [#allocation6], 0
    %14 = vsyncpa [#allocation9], 0
    %15 = vsyncpa [#allocation12], 0
    %16 = vsyncpa [#allocation7], 0
    // Predicated region
    $region2: #{tpu_custom_call.1} parent=1 // pred_check
      _
    $region3: #{tpu_custom_call.1} parent=1 // pred_check_branch
      %18 = sbr.rel (0) target = $region5
    $region4: #{tpu_custom_call.1} parent=1 // pred_region
      %20 = vsyncadd [#allocation6], 0
      %s21 = sshll.u32 %s0, 4
      %s22 = int_to_ptr.hbm [resolvable:$true] %s21
      %s23 = sshll.u32 [#allocation5], 4
      %s24 = int_to_ptr.vmem [resolvable:$true] %s23
      %29 = dma.hbm_to_vmem [thread:$0]  %s22, 512, %s24, [#allocation6], 128, 128, 8
    $region5: #{tpu_custom_call.1} parent=1 // pred_fallthru
      _
    // Predicated region
    $region6: #{tpu_custom_call.1} parent=1 // pred_check
      _
    $region7: #{tpu_custom_call.1} parent=1 // pred_check_branch
      %31 = sbr.rel (0) target = $region9
    $region8: #{tpu_custom_call.1} parent=1 // pred_region
      %33 = vsyncadd [#allocation9], 0
      %s34 = sshll.u32 %s1, 4
      %s35 = int_to_ptr.hbm [resolvable:$true] %s34
      %s36 = sshll.u32 [#allocation8], 4
      %s37 = int_to_ptr.vmem [resolvable:$true] %s36
      %42 = dma.hbm_to_vmem [thread:$0]  %s35, 6144, %s37, [#allocation9], 384, 384, 24
    $region9: #{tpu_custom_call.1} parent=1 // pred_fallthru
      _
    // Predicated region
    $region10: #{tpu_custom_call.1} parent=1 // pred_check
      _
    $region11: #{tpu_custom_call.1} parent=1 // pred_check_branch
      %44 = sbr.rel (0) target = $region13
    $region12: #{tpu_custom_call.1} parent=1 // pred_region
      %46 = vsyncadd [#allocation9], 0
      %s48 = sshll.u32 %s2, 4
      %s49 = int_to_ptr.hbm [resolvable:$true] %s48
      %s50 = sshll.u32 [#allocation10], 4
      %s51 = int_to_ptr.vmem [resolvable:$true] %s50
      %53 = dma.hbm_to_vmem [thread:$0]  %s49, 48, %s51, [#allocation9]
    $region13: #{tpu_custom_call.1} parent=1 // pred_fallthru
      _
    // Predicated region
    $region14: #{tpu_custom_call.1} parent=1 // pred_check
      _
    $region15: #{tpu_custom_call.1} parent=1 // pred_check_branch
      %55 = sbr.rel (0) target = $region17
    $region16: #{tpu_custom_call.1} parent=1 // pred_region
      %57 = vsyncadd [#allocation12], 0
      %s58 = sshll.u32 %s3, 4
      %s59 = int_to_ptr.hbm [resolvable:$true] %s58
      %s60 = sshll.u32 [#allocation11], 4
      %s61 = int_to_ptr.vmem [resolvable:$true] %s60
      %66 = dma.hbm_to_vmem [thread:$0]  %s59, 2048, %s61, [#allocation12], 128, 128, 8
    $region17: #{tpu_custom_call.1} parent=1 // pred_fallthru
      _
    // Predicated region
    $region18: #{tpu_custom_call.1} parent=1 // pred_check
      _
    $region19: #{tpu_custom_call.1} parent=1 // pred_check_branch
      %68 = sbr.rel (0) target = $region21
    $region20: #{tpu_custom_call.1} parent=1 // pred_region
      _
    $region21: #{tpu_custom_call.1} parent=1 // pred_fallthru
      _
    // Predicated region
    $region22: #{tpu_custom_call.1} parent=1 // pred_check
      _
    $region23: #{tpu_custom_call.1} parent=1 // pred_check_branch
      %70 = sbr.rel (0) target = $region25
    $region24: #{tpu_custom_call.1} parent=1 // pred_region
      %72 = vsyncadd [#allocation12], 0
      %s74 = sshll.u32 %s7, 4
      %s75 = int_to_ptr.hbm [resolvable:$true] %s74
      %s76 = sshll.u32 [#allocation13], 4
      %s77 = int_to_ptr.vmem [resolvable:$true] %s76
      %79 = dma.hbm_to_vmem [thread:$0]  %s75, 128, %s77, [#allocation12]
    $region25: #{tpu_custom_call.1} parent=1 // pred_fallthru
      _
    // Predicated region
    $region26: #{tpu_custom_call.1} parent=1 // pred_check
      _
    $region27: #{tpu_custom_call.1} parent=1 // pred_check_branch
      %81 = sbr.rel (0) target = $region29
    $region28: #{tpu_custom_call.1} parent=1 // pred_region
      %83 = dma.done [#allocation6], 512
    $region29: #{tpu_custom_call.1} parent=1 // pred_fallthru
      _
    // Predicated region
    $region30: #{tpu_custom_call.1} parent=1 // pred_check
      _
    $region31: #{tpu_custom_call.1} parent=1 // pred_check_branch
      %85 = sbr.rel (0) target = $region33
    $region32: #{tpu_custom_call.1} parent=1 // pred_region
      %87 = dma.done [#allocation9], 6144
    $region33: #{tpu_custom_call.1} parent=1 // pred_fallthru
      _
    // Predicated region
    $region34: #{tpu_custom_call.1} parent=1 // pred_check
      _
    $region35: #{tpu_custom_call.1} parent=1 // pred_check_branch
      %89 = sbr.rel (0) target = $region37
    $region36: #{tpu_custom_call.1} parent=1 // pred_region
      %91 = dma.done [#allocation9], 48
    $region37: #{tpu_custom_call.1} parent=1 // pred_fallthru
      _
    // Predicated region
    $region38: #{tpu_custom_call.1} parent=1 // pred_check
      _
    $region39: #{tpu_custom_call.1} parent=1 // pred_check_branch
      %93 = sbr.rel (0) target = $region41
    $region40: #{tpu_custom_call.1} parent=1 // pred_region
      %95 = dma.done [#allocation12], 2048
    $region41: #{tpu_custom_call.1} parent=1 // pred_fallthru
      _
    // Predicated region
    $region42: #{tpu_custom_call.1} parent=1 // pred_check
      _
    $region43: #{tpu_custom_call.1} parent=1 // pred_check_branch
      %97 = sbr.rel (0) target = $region45
    $region44: #{tpu_custom_call.1} parent=1 // pred_region
      %99 = dma.done [#allocation12], 128
    $region45: #{tpu_custom_call.1} parent=1 // pred_fallthru
      _
    // Predicated region
    $region46: #{tpu_custom_call.1} parent=1 // pred_check
      _
    $region47: #{tpu_custom_call.1} parent=1 // pred_check_branch
      %101 = sbr.rel target = $region49
    $region48: #{tpu_custom_call.1} parent=1 // pred_region
      %102 = sst [smem:[#allocation17]] [#allocation16]
      %103 = sst [smem:[#allocation18]] [#allocation15]
    $region49: #{tpu_custom_call.1} parent=1 // pred_fallthru
      _
    %105 = shalt.err (0)
    %s107 = sshll.u32 %s4, 4
    %s108 = int_to_ptr.hbm [resolvable:$true] %s107
    %s109 = sshll.u32 [#allocation2], 4
    %s110 = int_to_ptr.vmem [resolvable:$true] %s109
    %112 = dma.hbm_to_vmem [thread:$0]  %s108, 8192, %s110, [#allocation4]
    %s113 = scalar_lea.sflag [#allocation4], 1
    // Predicated region
    $region50: #{tpu_custom_call.1} parent=1 // pred_check
      _
    $region51: #{tpu_custom_call.1} parent=1 // pred_check_branch
      %115 = sbr.rel target = $region53
    $region52: #{tpu_custom_call.1} parent=1 // pred_region
      %116 = sst [smem:[#allocation17]] [#allocation20]
      %117 = sst [smem:[#allocation18]] [#allocation19]
    $region53: #{tpu_custom_call.1} parent=1 // pred_fallthru
      _
    %119 = shalt.err (0)
    %s121 = sshll.u32 %s6, 4
    %s122 = int_to_ptr.hbm [resolvable:$true] %s121
    %s123 = sshll.u32 [#allocation3], 4
    %s124 = int_to_ptr.vmem [resolvable:$true] %s123
    %126 = dma.hbm_to_vmem [thread:$0]  %s122, 8192, %s124, %s113
    %v127 = vld [vmem:[#allocation5] sm:$0xff]
    %v128 = vld [vmem:[#allocation5 + $0x8] sm:$0xff]
    %v129 = vld [vmem:[#allocation5 + $0x10] sm:$0xff]
    %v130 = vld [vmem:[#allocation5 + $0x18] sm:$0xff]
    %v131 = vld [vmem:[#allocation8] sm:$0xff]
    %v132 = vld [vmem:[#allocation8 + $0x8] sm:$0xff]
    %v133 = vld [vmem:[#allocation8 + $0x10] sm:$0xff]
    %v134 = vld [vmem:[#allocation8 + $0x18] sm:$0xff]
    %v135 = vld [vmem:[#allocation8 + $0x20] sm:$0xff]
    %v136 = vld [vmem:[#allocation8 + $0x28] sm:$0xff]
    %v137 = vld [vmem:[#allocation8 + $0x30] sm:$0xff]
    %v138 = vld [vmem:[#allocation8 + $0x38] sm:$0xff]
    %v139 = vld [vmem:[#allocation8 + $0x40] sm:$0xff]
    %v140 = vld [vmem:[#allocation8 + $0x48] sm:$0xff]
    %v141 = vld [vmem:[#allocation8 + $0x50] sm:$0xff]
    %v142 = vld [vmem:[#allocation8 + $0x58] sm:$0xff]
    %v143 = vld [vmem:[#allocation8 + $0x60] sm:$0xff]
    %v144 = vld [vmem:[#allocation8 + $0x68] sm:$0xff]
    %v145 = vld [vmem:[#allocation8 + $0x70] sm:$0xff]
    %v146 = vld [vmem:[#allocation8 + $0x78] sm:$0xff]
    %v147 = vld [vmem:[#allocation8 + $0x80] sm:$0xff]
    %v148 = vld [vmem:[#allocation8 + $0x88] sm:$0xff]
    %v149 = vld [vmem:[#allocation8 + $0x90] sm:$0xff]
    %v150 = vld [vmem:[#allocation8 + $0x98] sm:$0xff]
    %v151 = vld [vmem:[#allocation8 + $0xa0] sm:$0xff]
    %v152 = vld [vmem:[#allocation8 + $0xa8] sm:$0xff]
    %v153 = vld [vmem:[#allocation8 + $0xb0] sm:$0xff]
    %v154 = vld [vmem:[#allocation8 + $0xb8] sm:$0xff]
    %v155 = vld [vmem:[#allocation8 + $0xc0] sm:$0xff]
    %v156 = vld [vmem:[#allocation8 + $0xc8] sm:$0xff]
    %v157 = vld [vmem:[#allocation8 + $0xd0] sm:$0xff]
    %v158 = vld [vmem:[#allocation8 + $0xd8] sm:$0xff]
    %v159 = vld [vmem:[#allocation8 + $0xe0] sm:$0xff]
    %v160 = vld [vmem:[#allocation8 + $0xe8] sm:$0xff]
    %v161 = vld [vmem:[#allocation8 + $0xf0] sm:$0xff]
    %v162 = vld [vmem:[#allocation8 + $0xf8] sm:$0xff]
    %v163 = vld [vmem:[#allocation8 + $0x100] sm:$0xff]
    %v164 = vld [vmem:[#allocation8 + $0x108] sm:$0xff]
    %v165 = vld [vmem:[#allocation8 + $0x110] sm:$0xff]
    %v166 = vld [vmem:[#allocation8 + $0x118] sm:$0xff]
    %v167 = vld [vmem:[#allocation8 + $0x120] sm:$0xff]
    %v168 = vld [vmem:[#allocation8 + $0x128] sm:$0xff]
    %v169 = vld [vmem:[#allocation8 + $0x130] sm:$0xff]
    %v170 = vld [vmem:[#allocation8 + $0x138] sm:$0xff]
    %v171 = vld [vmem:[#allocation8 + $0x140] sm:$0xff]
    %v172 = vld [vmem:[#allocation8 + $0x148] sm:$0xff]
    %v173 = vld [vmem:[#allocation8 + $0x150] sm:$0xff]
    %v174 = vld [vmem:[#allocation8 + $0x158] sm:$0xff]
    %v175 = vld [vmem:[#allocation8 + $0x160] sm:$0xff]
    %v176 = vld [vmem:[#allocation8 + $0x168] sm:$0xff]
    %v177 = vld [vmem:[#allocation8 + $0x170] sm:$0xff]
    %v178 = vld [vmem:[#allocation8 + $0x178] sm:$0xff]
    %v179 = vld [vmem:[#allocation10] sm:$0x7]
    %v181 = vperm.slane %v179, 0
    %v182 = vperm.slane %v179, 1
    %v183 = vperm.slane %v179, 2
    %187 = vmatpush.msra.mxu0 %v176
    %188 = vmatpush.msra.mxu0 %v173
    %189 = vmatpush.msra.mxu0 %v170
    %190 = vmatpush.msra.mxu0 %v167
    %191 = vmatpush.msra.mxu0 %v164
    %192 = vmatpush.msra.mxu0 %v161
    %193 = vmatpush.msra.mxu0 %v158
    %194 = vmatpush.msra.mxu0 %v155
    %195 = vmatpush.msra.mxu0 %v152
    %196 = vmatpush.msra.mxu0 %v149
    %197 = vmatpush.msra.mxu0 %v146
    %198 = vmatpush.msra.mxu0 %v143
    %199 = vmatpush.msra.mxu0 %v140
    %200 = vmatpush.msra.mxu0 %v137
    %201 = vmatpush.msra.mxu0 %v134
    %202 = vmatpush.msra.mxu0 %v131
    %203 = vmatmul.f32.gmra.mxu0 %v127
    %v204 = vpop.f32.mrf.mxu0
    %v205 = vadd.f32 %v181, %v204
    %206 = vmatmul.f32.gmra.mxu0 %v128
    %v207 = vpop.f32.mrf.mxu0
    %v208 = vadd.f32 %v181, %v207
    %209 = vmatmul.f32.gmra.mxu0 %v129
    %v210 = vpop.f32.mrf.mxu0
    %v211 = vadd.f32 %v181, %v210
    %212 = vmatmul.f32.gmra.mxu0 %v130
    %v213 = vpop.f32.mrf.mxu0
    %v214 = vadd.f32 %v181, %v213
    %215 = vdwg.mxu0
    %216 = vmatpush.msra.mxu0 %v177
    %217 = vmatpush.msra.mxu0 %v174
    %218 = vmatpush.msra.mxu0 %v171
    %219 = vmatpush.msra.mxu0 %v168
    %220 = vmatpush.msra.mxu0 %v165
    %221 = vmatpush.msra.mxu0 %v162
    %222 = vmatpush.msra.mxu0 %v159
    %223 = vmatpush.msra.mxu0 %v156
    %224 = vmatpush.msra.mxu0 %v153
    %225 = vmatpush.msra.mxu0 %v150
    %226 = vmatpush.msra.mxu0 %v147
    %227 = vmatpush.msra.mxu0 %v144
    %228 = vmatpush.msra.mxu0 %v141
    %229 = vmatpush.msra.mxu0 %v138
    %230 = vmatpush.msra.mxu0 %v135
    %231 = vmatpush.msra.mxu0 %v132
    %232 = vmatmul.f32.gmra.mxu0 %v127
    %v233 = vpop.f32.mrf.mxu0
    %v234 = vadd.f32 %v182, %v233
    %235 = vmatmul.f32.gmra.mxu0 %v128
    %v236 = vpop.f32.mrf.mxu0
    %v237 = vadd.f32 %v182, %v236
    %238 = vmatmul.f32.gmra.mxu0 %v129
    %v239 = vpop.f32.mrf.mxu0
    %v240 = vadd.f32 %v182, %v239
    %241 = vmatmul.f32.gmra.mxu0 %v130
    %v242 = vpop.f32.mrf.mxu0
    %v243 = vadd.f32 %v182, %v242
    %244 = vdwg.mxu0
    %245 = vmatpush.msra.mxu0 %v178
    %246 = vmatpush.msra.mxu0 %v175
    %247 = vmatpush.msra.mxu0 %v172
    %248 = vmatpush.msra.mxu0 %v169
    %249 = vmatpush.msra.mxu0 %v166
    %250 = vmatpush.msra.mxu0 %v163
    %251 = vmatpush.msra.mxu0 %v160
    %252 = vmatpush.msra.mxu0 %v157
    %253 = vmatpush.msra.mxu0 %v154
    %254 = vmatpush.msra.mxu0 %v151
    %255 = vmatpush.msra.mxu0 %v148
    %256 = vmatpush.msra.mxu0 %v145
    %257 = vmatpush.msra.mxu0 %v142
    %258 = vmatpush.msra.mxu0 %v139
    %259 = vmatpush.msra.mxu0 %v136
    %260 = vmatpush.msra.mxu0 %v133
    %261 = vmatmul.f32.gmra.mxu0 %v127
    %v262 = vpop.f32.mrf.mxu0
    %v263 = vadd.f32 %v183, %v262
    %264 = vmatmul.f32.gmra.mxu0 %v128
    %v265 = vpop.f32.mrf.mxu0
    %v266 = vadd.f32 %v183, %v265
    %267 = vmatmul.f32.gmra.mxu0 %v129
    %v268 = vpop.f32.mrf.mxu0
    %v269 = vadd.f32 %v183, %v268
    %270 = vmatmul.f32.gmra.mxu0 %v130
    %v271 = vpop.f32.mrf.mxu0
    %v272 = vadd.f32 %v183, %v271
    %273 = vdwg.mxu0
    %v274 = vld [vmem:[#allocation13] sm:$0x3f]
    %vm275 = vcmask 261120
    %v277 = vsel %vm275, %v205, 0
    %v280 = vsel %vm275, %v208, 0
    %v283 = vsel %vm275, %v234, 0
    %v286 = vsel %vm275, %v237, 0
    %288 = vmatpush.xpose.msra.mxu0 0.0
    %289 = vmatpush.xpose.msra.mxu0 0.0
    %290 = vmatpush.xpose.msra.mxu0 0.0
    %291 = vmatpush.xpose.msra.mxu0 0.0
    %292 = vmatpush.xpose.msra.mxu0 0.0
    %293 = vmatpush.xpose.msra.mxu0 0.0
    %294 = vmatpush.xpose.msra.mxu0 0.0
    %295 = vmatpush.xpose.msra.mxu0 0.0
    %296 = vmatpush.xpose.msra.mxu0 0.0
    %297 = vmatpush.xpose.msra.mxu0 0.0
    %298 = vmatpush.xpose.msra.mxu0 0.0
    %299 = vmatpush.xpose.msra.mxu0 0.0
    %300 = vmatpush.xpose.msra.mxu0 0.0
    %301 = vmatpush.xpose.msra.mxu0 0.0
    %302 = vmatpush.xpose.msra.mxu0 %v286
    %303 = vmatpush.xpose.msra.mxu0 %v283
    %304 = vmatmul.f32.gmra.mxu0 %v277
    %v305 = vpop.f32.mrf.mxu0
    %v306 = vadd.f32 0.0, %v305
    %307 = vmatmul.f32.gmra.mxu0 %v280
    %v308 = vpop.f32.mrf.mxu0
    %v309 = vadd.f32 0.0, %v308
    %310 = vdwg.mxu0
    %v312 = vsel %vm275, %v211, 0
    %v315 = vsel %vm275, %v214, 0
    %v318 = vsel %vm275, %v240, 0
    %v321 = vsel %vm275, %v243, 0
    %323 = vmatpush.xpose.msra.mxu0 0.0
    %324 = vmatpush.xpose.msra.mxu0 0.0
    %325 = vmatpush.xpose.msra.mxu0 0.0
    %326 = vmatpush.xpose.msra.mxu0 0.0
    %327 = vmatpush.xpose.msra.mxu0 0.0
    %328 = vmatpush.xpose.msra.mxu0 0.0
    %329 = vmatpush.xpose.msra.mxu0 0.0
    %330 = vmatpush.xpose.msra.mxu0 0.0
    %331 = vmatpush.xpose.msra.mxu0 0.0
    %332 = vmatpush.xpose.msra.mxu0 0.0
    %333 = vmatpush.xpose.msra.mxu0 0.0
    %334 = vmatpush.xpose.msra.mxu0 0.0
    %335 = vmatpush.xpose.msra.mxu0 0.0
    %336 = vmatpush.xpose.msra.mxu0 0.0
    %337 = vmatpush.xpose.msra.mxu0 %v321
    %338 = vmatpush.xpose.msra.mxu0 %v318
    %339 = vmatmul.f32.gmra.mxu0 %v312
    %v340 = vpop.f32.mrf.mxu0
    %v341 = vadd.f32 0.0, %v340
    %342 = vmatmul.f32.gmra.mxu0 %v315
    %v343 = vpop.f32.mrf.mxu0
    %v344 = vadd.f32 0.0, %v343
    %345 = vdwg.mxu0
    %v346 = vmul.f32 %v306, 0.17677669
    %v347 = vmul.f32 %v309, 0.17677669
    %v348 = vmul.f32 %v341, 0.17677669
    %v349 = vmul.f32 %v344, 0.17677669
    %vm350 = vcmask 130048
    %v351 = vsel %vm350, %v346, -inf
    %352 = vmax.xlane.f32.xlu0 %v351
    %v353 = vpop.xlane.xlu0 %352
    %v354 = vsel %vm350, %v347, -inf
    %355 = vmax.xlane.f32.xlu0 %v354
    %v356 = vpop.xlane.xlu0 %355
    %v357 = vsel %vm350, %v348, -inf
    %358 = vmax.xlane.f32.xlu0 %v357
    %v359 = vpop.xlane.xlu0 %358
    %v360 = vsel %vm350, %v349, -inf
    %361 = vmax.xlane.f32.xlu0 %v360
    %v362 = vpop.xlane.xlu0 %361
    %v363 = vsub.f32 %v346, %v353
    %v364 = vsub.f32 %v347, %v356
    %v365 = vsub.f32 %v348, %v359
    %v366 = vsub.f32 %v349, %v362
    %v367 = vmul.f32 %v363, 1.442695
    %v368 = vpow.pop %v367
    %v369 = vmul.f32 %v364, 1.442695
    %v370 = vpow.pop %v369
    %v371 = vmul.f32 %v365, 1.442695
    %v372 = vpow.pop %v371
    %v373 = vmul.f32 %v366, 1.442695
    %v374 = vpow.pop %v373
    %v375 = vsel %vm350, %v368, 0.0
    %376 = vadd.xlane.f32.xlu0 %v375
    %v377 = vpop.xlane.xlu0 %376
    %v378 = vsel %vm350, %v370, 0.0
    %379 = vadd.xlane.f32.xlu0 %v378
    %v380 = vpop.xlane.xlu0 %379
    %v381 = vsel %vm350, %v372, 0.0
    %382 = vadd.xlane.f32.xlu0 %v381
    %v383 = vpop.xlane.xlu0 %382
    %v384 = vsel %vm350, %v374, 0.0
    %385 = vadd.xlane.f32.xlu0 %v384
    %v386 = vpop.xlane.xlu0 %385
    %v387 = vrcp.pop %v377
    %v388 = vmul.f32 %v377, %v387
    %v389 = vsub.f32 1.0, %v388
    %v390 = vmul.f32 %v387, %v389
    %v391 = vadd.f32 %v387, %v390
    %vm392 = vweird.f32 %v377
    %vm393 = vweird.f32 %v387
    %vm394 = vmor %vm392, %vm393
    %v395 = vsel %vm394, %v387, %v391
    %v396 = vand.u32 2147483647, %v377
    %vm397 = vcmp.eq.f32.partialorder %v396, 8.507059e+37
    %v398 = vand.u32 %v377, 2147483648
    %v399 = vor.u32 1.1754944e-38, %v398
    %v400 = vsel %vm397, %v399, %v395
    %v401 = vrcp.pop %v380
    %v402 = vmul.f32 %v380, %v401
    %v403 = vsub.f32 1.0, %v402
    %v404 = vmul.f32 %v401, %v403
    %v405 = vadd.f32 %v401, %v404
    %vm406 = vweird.f32 %v380
    %vm407 = vweird.f32 %v401
    %vm408 = vmor %vm406, %vm407
    %v409 = vsel %vm408, %v401, %v405
    %v410 = vand.u32 2147483647, %v380
    %vm411 = vcmp.eq.f32.partialorder %v410, 8.507059e+37
    %v412 = vand.u32 %v380, 2147483648
    %v413 = vor.u32 1.1754944e-38, %v412
    %v414 = vsel %vm411, %v413, %v409
    %v415 = vrcp.pop %v383
    %v416 = vmul.f32 %v383, %v415
    %v417 = vsub.f32 1.0, %v416
    %v418 = vmul.f32 %v415, %v417
    %v419 = vadd.f32 %v415, %v418
    %vm420 = vweird.f32 %v383
    %vm421 = vweird.f32 %v415
    %vm422 = vmor %vm420, %vm421
    %v423 = vsel %vm422, %v415, %v419
    %v424 = vand.u32 2147483647, %v383
    %vm425 = vcmp.eq.f32.partialorder %v424, 8.507059e+37
    %v426 = vand.u32 %v383, 2147483648
    %v427 = vor.u32 1.1754944e-38, %v426
    %v428 = vsel %vm425, %v427, %v423
    %v429 = vrcp.pop %v386
    %v430 = vmul.f32 %v386, %v429
    %v431 = vsub.f32 1.0, %v430
    %v432 = vmul.f32 %v429, %v431
    %v433 = vadd.f32 %v429, %v432
    %vm434 = vweird.f32 %v386
    %vm435 = vweird.f32 %v429
    %vm436 = vmor %vm434, %vm435
    %v437 = vsel %vm436, %v429, %v433
    %v438 = vand.u32 2147483647, %v386
    %vm439 = vcmp.eq.f32.partialorder %v438, 8.507059e+37
    %v440 = vand.u32 %v386, 2147483648
    %v441 = vor.u32 1.1754944e-38, %v440
    %v442 = vsel %vm439, %v441, %v437
    %v443 = vmul.f32 %v368, %v400
    %v444 = vmul.f32 %v370, %v414
    %v445 = vmul.f32 %v372, %v428
    %v446 = vmul.f32 %v374, %v442
    %v448 = vsel %vm350, %v443, 0
    %v451 = vsel %vm350, %v444, 0
    %453 = vmatpush.msra.mxu0 0.0
    %454 = vmatpush.msra.mxu0 0.0
    %455 = vmatpush.msra.mxu0 0.0
    %456 = vmatpush.msra.mxu0 0.0
    %457 = vmatpush.msra.mxu0 0.0
    %458 = vmatpush.msra.mxu0 0.0
    %459 = vmatpush.msra.mxu0 0.0
    %460 = vmatpush.msra.mxu0 0.0
    %461 = vmatpush.msra.mxu0 0.0
    %462 = vmatpush.msra.mxu0 0.0
    %463 = vmatpush.msra.mxu0 0.0
    %464 = vmatpush.msra.mxu0 0.0
    %465 = vmatpush.msra.mxu0 0.0
    %466 = vmatpush.msra.mxu0 0.0
    %467 = vmatpush.msra.mxu0 %v266
    %468 = vmatpush.msra.mxu0 %v263
    %469 = vmatmul.f32.gmra.mxu0 %v448
    %v470 = vpop.f32.mrf.mxu0
    %v471 = vadd.f32 0.0, %v470
    %472 = vmatmul.f32.gmra.mxu0 %v451
    %v473 = vpop.f32.mrf.mxu0
    %v474 = vadd.f32 0.0, %v473
    %475 = vdwg.mxu0
    %v477 = vsel %vm350, %v445, 0
    %v480 = vsel %vm350, %v446, 0
    %482 = vmatpush.msra.mxu0 0.0
    %483 = vmatpush.msra.mxu0 0.0
    %484 = vmatpush.msra.mxu0 0.0
    %485 = vmatpush.msra.mxu0 0.0
    %486 = vmatpush.msra.mxu0 0.0
    %487 = vmatpush.msra.mxu0 0.0
    %488 = vmatpush.msra.mxu0 0.0
    %489 = vmatpush.msra.mxu0 0.0
    %490 = vmatpush.msra.mxu0 0.0
    %491 = vmatpush.msra.mxu0 0.0
    %492 = vmatpush.msra.mxu0 0.0
    %493 = vmatpush.msra.mxu0 0.0
    %494 = vmatpush.msra.mxu0 0.0
    %495 = vmatpush.msra.mxu0 0.0
    %496 = vmatpush.msra.mxu0 %v272
    %497 = vmatpush.msra.mxu0 %v269
    %498 = vmatmul.f32.gmra.mxu0 %v477
    %v499 = vpop.f32.mrf.mxu0
    %v500 = vadd.f32 0.0, %v499
    %501 = vmatmul.f32.gmra.mxu0 %v480
    %v502 = vpop.f32.mrf.mxu0
    %v503 = vadd.f32 0.0, %v502
    %504 = vdwg.mxu0
    %505 = vrot.lane.b32.xlu0 %v205, 96
    %v506 = vpop.permute.xlu0 %505
    %507 = vrot.lane.b32.xlu0 %v208, 96
    %v508 = vpop.permute.xlu0 %507
    %509 = vrot.lane.b32.xlu0 %v234, 96
    %v510 = vpop.permute.xlu0 %509
    %511 = vrot.lane.b32.xlu0 %v237, 96
    %v512 = vpop.permute.xlu0 %511
    %v513 = vsel %vm275, %v506, 0
    %v515 = vsel %vm275, %v508, 0
    %v517 = vsel %vm275, %v510, 0
    %v519 = vsel %vm275, %v512, 0
    %521 = vmatpush.xpose.msra.mxu0 0.0
    %522 = vmatpush.xpose.msra.mxu0 0.0
    %523 = vmatpush.xpose.msra.mxu0 0.0
    %524 = vmatpush.xpose.msra.mxu0 0.0
    %525 = vmatpush.xpose.msra.mxu0 0.0
    %526 = vmatpush.xpose.msra.mxu0 0.0
    %527 = vmatpush.xpose.msra.mxu0 0.0
    %528 = vmatpush.xpose.msra.mxu0 0.0
    %529 = vmatpush.xpose.msra.mxu0 0.0
    %530 = vmatpush.xpose.msra.mxu0 0.0
    %531 = vmatpush.xpose.msra.mxu0 0.0
    %532 = vmatpush.xpose.msra.mxu0 0.0
    %533 = vmatpush.xpose.msra.mxu0 0.0
    %534 = vmatpush.xpose.msra.mxu0 0.0
    %535 = vmatpush.xpose.msra.mxu0 %v519
    %536 = vmatpush.xpose.msra.mxu0 %v517
    %537 = vmatmul.f32.gmra.mxu0 %v513
    %v538 = vpop.f32.mrf.mxu0
    %v539 = vadd.f32 0.0, %v538
    %540 = vmatmul.f32.gmra.mxu0 %v515
    %v541 = vpop.f32.mrf.mxu0
    %v542 = vadd.f32 0.0, %v541
    %543 = vdwg.mxu0
    %544 = vrot.lane.b32.xlu0 %v211, 96
    %v545 = vpop.permute.xlu0 %544
    %546 = vrot.lane.b32.xlu0 %v214, 96
    %v547 = vpop.permute.xlu0 %546
    %548 = vrot.lane.b32.xlu0 %v240, 96
    %v549 = vpop.permute.xlu0 %548
    %550 = vrot.lane.b32.xlu0 %v243, 96
    %v551 = vpop.permute.xlu0 %550
    %v552 = vsel %vm275, %v545, 0
    %v554 = vsel %vm275, %v547, 0
    %v556 = vsel %vm275, %v549, 0
    %v558 = vsel %vm275, %v551, 0
    %560 = vmatpush.xpose.msra.mxu0 0.0
    %561 = vmatpush.xpose.msra.mxu0 0.0
    %562 = vmatpush.xpose.msra.mxu0 0.0
    %563 = vmatpush.xpose.msra.mxu0 0.0
    %564 = vmatpush.xpose.msra.mxu0 0.0
    %565 = vmatpush.xpose.msra.mxu0 0.0
    %566 = vmatpush.xpose.msra.mxu0 0.0
    %567 = vmatpush.xpose.msra.mxu0 0.0
    %568 = vmatpush.xpose.msra.mxu0 0.0
    %569 = vmatpush.xpose.msra.mxu0 0.0
    %570 = vmatpush.xpose.msra.mxu0 0.0
    %571 = vmatpush.xpose.msra.mxu0 0.0
    %572 = vmatpush.xpose.msra.mxu0 0.0
    %573 = vmatpush.xpose.msra.mxu0 0.0
    %574 = vmatpush.xpose.msra.mxu0 %v558
    %575 = vmatpush.xpose.msra.mxu0 %v556
    %576 = vmatmul.f32.gmra.mxu0 %v552
    %v577 = vpop.f32.mrf.mxu0
    %v578 = vadd.f32 0.0, %v577
    %579 = vmatmul.f32.gmra.mxu0 %v554
    %v580 = vpop.f32.mrf.mxu0
    %v581 = vadd.f32 0.0, %v580
    %582 = vdwg.mxu0
    %v583 = vmul.f32 %v539, 0.17677669
    %v584 = vmul.f32 %v542, 0.17677669
    %v585 = vmul.f32 %v578, 0.17677669
    %v586 = vmul.f32 %v581, 0.17677669
    %v587 = vsel %vm350, %v583, -inf
    %588 = vmax.xlane.f32.xlu0 %v587
    %v589 = vpop.xlane.xlu0 %588
    %v590 = vsel %vm350, %v584, -inf
    %591 = vmax.xlane.f32.xlu0 %v590
    %v592 = vpop.xlane.xlu0 %591
    %v593 = vsel %vm350, %v585, -inf
    %594 = vmax.xlane.f32.xlu0 %v593
    %v595 = vpop.xlane.xlu0 %594
    %v596 = vsel %vm350, %v586, -inf
    %597 = vmax.xlane.f32.xlu0 %v596
    %v598 = vpop.xlane.xlu0 %597
    %v599 = vsub.f32 %v583, %v589
    %v600 = vsub.f32 %v584, %v592
    %v601 = vsub.f32 %v585, %v595
    %v602 = vsub.f32 %v586, %v598
    %v603 = vmul.f32 %v599, 1.442695
    %v604 = vpow.pop %v603
    %v605 = vmul.f32 %v600, 1.442695
    %v606 = vpow.pop %v605
    %v607 = vmul.f32 %v601, 1.442695
    %v608 = vpow.pop %v607
    %v609 = vmul.f32 %v602, 1.442695
    %v610 = vpow.pop %v609
    %v611 = vsel %vm350, %v604, 0.0
    %612 = vadd.xlane.f32.xlu0 %v611
    %v613 = vpop.xlane.xlu0 %612
    %v614 = vsel %vm350, %v606, 0.0
    %615 = vadd.xlane.f32.xlu0 %v614
    %v616 = vpop.xlane.xlu0 %615
    %v617 = vsel %vm350, %v608, 0.0
    %618 = vadd.xlane.f32.xlu0 %v617
    %v619 = vpop.xlane.xlu0 %618
    %v620 = vsel %vm350, %v610, 0.0
    %621 = vadd.xlane.f32.xlu0 %v620
    %v622 = vpop.xlane.xlu0 %621
    %v623 = vrcp.pop %v613
    %v624 = vmul.f32 %v613, %v623
    %v625 = vsub.f32 1.0, %v624
    %v626 = vmul.f32 %v623, %v625
    %v627 = vadd.f32 %v623, %v626
    %vm628 = vweird.f32 %v613
    %vm629 = vweird.f32 %v623
    %vm630 = vmor %vm628, %vm629
    %v631 = vsel %vm630, %v623, %v627
    %v632 = vand.u32 2147483647, %v613
    %vm633 = vcmp.eq.f32.partialorder %v632, 8.507059e+37
    %v634 = vand.u32 %v613, 2147483648
    %v635 = vor.u32 1.1754944e-38, %v634
    %v636 = vsel %vm633, %v635, %v631
    %v637 = vrcp.pop %v616
    %v638 = vmul.f32 %v616, %v637
    %v639 = vsub.f32 1.0, %v638
    %v640 = vmul.f32 %v637, %v639
    %v641 = vadd.f32 %v637, %v640
    %vm642 = vweird.f32 %v616
    %vm643 = vweird.f32 %v637
    %vm644 = vmor %vm642, %vm643
    %v645 = vsel %vm644, %v637, %v641
    %v646 = vand.u32 2147483647, %v616
    %vm647 = vcmp.eq.f32.partialorder %v646, 8.507059e+37
    %v648 = vand.u32 %v616, 2147483648
    %v649 = vor.u32 1.1754944e-38, %v648
    %v650 = vsel %vm647, %v649, %v645
    %v651 = vrcp.pop %v619
    %v652 = vmul.f32 %v619, %v651
    %v653 = vsub.f32 1.0, %v652
    %v654 = vmul.f32 %v651, %v653
    %v655 = vadd.f32 %v651, %v654
    %vm656 = vweird.f32 %v619
    %vm657 = vweird.f32 %v651
    %vm658 = vmor %vm656, %vm657
    %v659 = vsel %vm658, %v651, %v655
    %v660 = vand.u32 2147483647, %v619
    %vm661 = vcmp.eq.f32.partialorder %v660, 8.507059e+37
    %v662 = vand.u32 %v619, 2147483648
    %v663 = vor.u32 1.1754944e-38, %v662
    %v664 = vsel %vm661, %v663, %v659
    %v665 = vrcp.pop %v622
    %v666 = vmul.f32 %v622, %v665
    %v667 = vsub.f32 1.0, %v666
    %v668 = vmul.f32 %v665, %v667
    %v669 = vadd.f32 %v665, %v668
    %vm670 = vweird.f32 %v622
    %vm671 = vweird.f32 %v665
    %vm672 = vmor %vm670, %vm671
    %v673 = vsel %vm672, %v665, %v669
    %v674 = vand.u32 2147483647, %v622
    %vm675 = vcmp.eq.f32.partialorder %v674, 8.507059e+37
    %v676 = vand.u32 %v622, 2147483648
    %v677 = vor.u32 1.1754944e-38, %v676
    %v678 = vsel %vm675, %v677, %v673
    %v679 = vmul.f32 %v604, %v636
    %v680 = vmul.f32 %v606, %v650
    %v681 = vmul.f32 %v608, %v664
    %v682 = vmul.f32 %v610, %v678
    %685 = vrot.lane.b32.xlu0 %v263, 96
    %v686 = vpop.permute.xlu0 %685
    %687 = vrot.lane.b32.xlu0 %v266, 96
    %v688 = vpop.permute.xlu0 %687
    %v692 = vsel %vm350, %v679, 0
    %v695 = vsel %vm350, %v680, 0
    %697 = vmatpush.msra.mxu0 0.0
    %698 = vmatpush.msra.mxu0 0.0
    %699 = vmatpush.msra.mxu0 0.0
    %700 = vmatpush.msra.mxu0 0.0
    %701 = vmatpush.msra.mxu0 0.0
    %702 = vmatpush.msra.mxu0 0.0
    %703 = vmatpush.msra.mxu0 0.0
    %704 = vmatpush.msra.mxu0 0.0
    %705 = vmatpush.msra.mxu0 0.0
    %706 = vmatpush.msra.mxu0 0.0
    %707 = vmatpush.msra.mxu0 0.0
    %708 = vmatpush.msra.mxu0 0.0
    %709 = vmatpush.msra.mxu0 0.0
    %710 = vmatpush.msra.mxu0 0.0
    %711 = vmatpush.msra.mxu0 %v688
    %712 = vmatpush.msra.mxu0 %v686
    %713 = vmatmul.f32.gmra.mxu0 %v692
    %v714 = vpop.f32.mrf.mxu0
    %v715 = vadd.f32 0.0, %v714
    %716 = vmatmul.f32.gmra.mxu0 %v695
    %v717 = vpop.f32.mrf.mxu0
    %v718 = vadd.f32 0.0, %v717
    %719 = vdwg.mxu0
    %722 = vrot.lane.b32.xlu0 %v269, 96
    %v723 = vpop.permute.xlu0 %722
    %724 = vrot.lane.b32.xlu0 %v272, 96
    %v725 = vpop.permute.xlu0 %724
    %v729 = vsel %vm350, %v681, 0
    %v732 = vsel %vm350, %v682, 0
    %734 = vmatpush.msra.mxu0 0.0
    %735 = vmatpush.msra.mxu0 0.0
    %736 = vmatpush.msra.mxu0 0.0
    %737 = vmatpush.msra.mxu0 0.0
    %738 = vmatpush.msra.mxu0 0.0
    %739 = vmatpush.msra.mxu0 0.0
    %740 = vmatpush.msra.mxu0 0.0
    %741 = vmatpush.msra.mxu0 0.0
    %742 = vmatpush.msra.mxu0 0.0
    %743 = vmatpush.msra.mxu0 0.0
    %744 = vmatpush.msra.mxu0 0.0
    %745 = vmatpush.msra.mxu0 0.0
    %746 = vmatpush.msra.mxu0 0.0
    %747 = vmatpush.msra.mxu0 0.0
    %748 = vmatpush.msra.mxu0 %v725
    %749 = vmatpush.msra.mxu0 %v723
    %750 = vmatmul.f32.gmra.mxu0 %v729
    %v751 = vpop.f32.mrf.mxu0
    %v752 = vadd.f32 0.0, %v751
    %753 = vmatmul.f32.gmra.mxu0 %v732
    %v754 = vpop.f32.mrf.mxu0
    %v755 = vadd.f32 0.0, %v754
    %756 = vdwg.mxu0
    %757 = vrot.lane.b32.xlu0 %v205, 64
    %v758 = vpop.permute.xlu0 %757
    %759 = vrot.lane.b32.xlu0 %v208, 64
    %v760 = vpop.permute.xlu0 %759
    %761 = vrot.lane.b32.xlu0 %v234, 64
    %v762 = vpop.permute.xlu0 %761
    %763 = vrot.lane.b32.xlu0 %v237, 64
    %v764 = vpop.permute.xlu0 %763
    %v765 = vsel %vm275, %v758, 0
    %v767 = vsel %vm275, %v760, 0
    %v769 = vsel %vm275, %v762, 0
    %v771 = vsel %vm275, %v764, 0
    %773 = vmatpush.xpose.msra.mxu0 0.0
    %774 = vmatpush.xpose.msra.mxu0 0.0
    %775 = vmatpush.xpose.msra.mxu0 0.0
    %776 = vmatpush.xpose.msra.mxu0 0.0
    %777 = vmatpush.xpose.msra.mxu0 0.0
    %778 = vmatpush.xpose.msra.mxu0 0.0
    %779 = vmatpush.xpose.msra.mxu0 0.0
    %780 = vmatpush.xpose.msra.mxu0 0.0
    %781 = vmatpush.xpose.msra.mxu0 0.0
    %782 = vmatpush.xpose.msra.mxu0 0.0
    %783 = vmatpush.xpose.msra.mxu0 0.0
    %784 = vmatpush.xpose.msra.mxu0 0.0
    %785 = vmatpush.xpose.msra.mxu0 0.0
    %786 = vmatpush.xpose.msra.mxu0 0.0
    %787 = vmatpush.xpose.msra.mxu0 %v771
    %788 = vmatpush.xpose.msra.mxu0 %v769
    %789 = vmatmul.f32.gmra.mxu0 %v765
    %v790 = vpop.f32.mrf.mxu0
    %v791 = vadd.f32 0.0, %v790
    %792 = vmatmul.f32.gmra.mxu0 %v767
    %v793 = vpop.f32.mrf.mxu0
    %v794 = vadd.f32 0.0, %v793
    %795 = vdwg.mxu0
    %796 = vrot.lane.b32.xlu0 %v211, 64
    %v797 = vpop.permute.xlu0 %796
    %798 = vrot.lane.b32.xlu0 %v214, 64
    %v799 = vpop.permute.xlu0 %798
    %800 = vrot.lane.b32.xlu0 %v240, 64
    %v801 = vpop.permute.xlu0 %800
    %802 = vrot.lane.b32.xlu0 %v243, 64
    %v803 = vpop.permute.xlu0 %802
    %v804 = vsel %vm275, %v797, 0
    %v806 = vsel %vm275, %v799, 0
    %v808 = vsel %vm275, %v801, 0
    %v810 = vsel %vm275, %v803, 0
    %812 = vmatpush.xpose.msra.mxu0 0.0
    %813 = vmatpush.xpose.msra.mxu0 0.0
    %814 = vmatpush.xpose.msra.mxu0 0.0
    %815 = vmatpush.xpose.msra.mxu0 0.0
    %816 = vmatpush.xpose.msra.mxu0 0.0
    %817 = vmatpush.xpose.msra.mxu0 0.0
    %818 = vmatpush.xpose.msra.mxu0 0.0
    %819 = vmatpush.xpose.msra.mxu0 0.0
    %820 = vmatpush.xpose.msra.mxu0 0.0
    %821 = vmatpush.xpose.msra.mxu0 0.0
    %822 = vmatpush.xpose.msra.mxu0 0.0
    %823 = vmatpush.xpose.msra.mxu0 0.0
    %824 = vmatpush.xpose.msra.mxu0 0.0
    %825 = vmatpush.xpose.msra.mxu0 0.0
    %826 = vmatpush.xpose.msra.mxu0 %v810
    %827 = vmatpush.xpose.msra.mxu0 %v808
    %828 = vmatmul.f32.gmra.mxu0 %v804
    %v829 = vpop.f32.mrf.mxu0
    %v830 = vadd.f32 0.0, %v829
    %831 = vmatmul.f32.gmra.mxu0 %v806
    %v832 = vpop.f32.mrf.mxu0
    %v833 = vadd.f32 0.0, %v832
    %834 = vdwg.mxu0
    %v835 = vmul.f32 %v791, 0.17677669
    %v836 = vmul.f32 %v794, 0.17677669
    %v837 = vmul.f32 %v830, 0.17677669
    %v838 = vmul.f32 %v833, 0.17677669
    %v839 = vsel %vm350, %v835, -inf
    %840 = vmax.xlane.f32.xlu0 %v839
    %v841 = vpop.xlane.xlu0 %840
    %v842 = vsel %vm350, %v836, -inf
    %843 = vmax.xlane.f32.xlu0 %v842
    %v844 = vpop.xlane.xlu0 %843
    %v845 = vsel %vm350, %v837, -inf
    %846 = vmax.xlane.f32.xlu0 %v845
    %v847 = vpop.xlane.xlu0 %846
    %v848 = vsel %vm350, %v838, -inf
    %849 = vmax.xlane.f32.xlu0 %v848
    %v850 = vpop.xlane.xlu0 %849
    %v851 = vsub.f32 %v835, %v841
    %v852 = vsub.f32 %v836, %v844
    %v853 = vsub.f32 %v837, %v847
    %v854 = vsub.f32 %v838, %v850
    %v855 = vmul.f32 %v851, 1.442695
    %v856 = vpow.pop %v855
    %v857 = vmul.f32 %v852, 1.442695
    %v858 = vpow.pop %v857
    %v859 = vmul.f32 %v853, 1.442695
    %v860 = vpow.pop %v859
    %v861 = vmul.f32 %v854, 1.442695
    %v862 = vpow.pop %v861
    %v863 = vsel %vm350, %v856, 0.0
    %864 = vadd.xlane.f32.xlu0 %v863
    %v865 = vpop.xlane.xlu0 %864
    %v866 = vsel %vm350, %v858, 0.0
    %867 = vadd.xlane.f32.xlu0 %v866
    %v868 = vpop.xlane.xlu0 %867
    %v869 = vsel %vm350, %v860, 0.0
    %870 = vadd.xlane.f32.xlu0 %v869
    %v871 = vpop.xlane.xlu0 %870
    %v872 = vsel %vm350, %v862, 0.0
    %873 = vadd.xlane.f32.xlu0 %v872
    %v874 = vpop.xlane.xlu0 %873
    %v875 = vrcp.pop %v865
    %v876 = vmul.f32 %v865, %v875
    %v877 = vsub.f32 1.0, %v876
    %v878 = vmul.f32 %v875, %v877
    %v879 = vadd.f32 %v875, %v878
    %vm880 = vweird.f32 %v865
    %vm881 = vweird.f32 %v875
    %vm882 = vmor %vm880, %vm881
    %v883 = vsel %vm882, %v875, %v879
    %v884 = vand.u32 2147483647, %v865
    %vm885 = vcmp.eq.f32.partialorder %v884, 8.507059e+37
    %v886 = vand.u32 %v865, 2147483648
    %v887 = vor.u32 1.1754944e-38, %v886
    %v888 = vsel %vm885, %v887, %v883
    %v889 = vrcp.pop %v868
    %v890 = vmul.f32 %v868, %v889
    %v891 = vsub.f32 1.0, %v890
    %v892 = vmul.f32 %v889, %v891
    %v893 = vadd.f32 %v889, %v892
    %vm894 = vweird.f32 %v868
    %vm895 = vweird.f32 %v889
    %vm896 = vmor %vm894, %vm895
    %v897 = vsel %vm896, %v889, %v893
    %v898 = vand.u32 2147483647, %v868
    %vm899 = vcmp.eq.f32.partialorder %v898, 8.507059e+37
    %v900 = vand.u32 %v868, 2147483648
    %v901 = vor.u32 1.1754944e-38, %v900
    %v902 = vsel %vm899, %v901, %v897
    %v903 = vrcp.pop %v871
    %v904 = vmul.f32 %v871, %v903
    %v905 = vsub.f32 1.0, %v904
    %v906 = vmul.f32 %v903, %v905
    %v907 = vadd.f32 %v903, %v906
    %vm908 = vweird.f32 %v871
    %vm909 = vweird.f32 %v903
    %vm910 = vmor %vm908, %vm909
    %v911 = vsel %vm910, %v903, %v907
    %v912 = vand.u32 2147483647, %v871
    %vm913 = vcmp.eq.f32.partialorder %v912, 8.507059e+37
    %v914 = vand.u32 %v871, 2147483648
    %v915 = vor.u32 1.1754944e-38, %v914
    %v916 = vsel %vm913, %v915, %v911
    %v917 = vrcp.pop %v874
    %v918 = vmul.f32 %v874, %v917
    %v919 = vsub.f32 1.0, %v918
    %v920 = vmul.f32 %v917, %v919
    %v921 = vadd.f32 %v917, %v920
    %vm922 = vweird.f32 %v874
    %vm923 = vweird.f32 %v917
    %vm924 = vmor %vm922, %vm923
    %v925 = vsel %vm924, %v917, %v921
    %v926 = vand.u32 2147483647, %v874
    %vm927 = vcmp.eq.f32.partialorder %v926, 8.507059e+37
    %v928 = vand.u32 %v874, 2147483648
    %v929 = vor.u32 1.1754944e-38, %v928
    %v930 = vsel %vm927, %v929, %v925
    %v931 = vmul.f32 %v856, %v888
    %v932 = vmul.f32 %v858, %v902
    %v933 = vmul.f32 %v860, %v916
    %v934 = vmul.f32 %v862, %v930
    %935 = vrot.lane.b32.xlu0 %v263, 64
    %v936 = vpop.permute.xlu0 %935
    %937 = vrot.lane.b32.xlu0 %v266, 64
    %v938 = vpop.permute.xlu0 %937
    %v942 = vsel %vm350, %v931, 0
    %v945 = vsel %vm350, %v932, 0
    %947 = vmatpush.msra.mxu0 0.0
    %948 = vmatpush.msra.mxu0 0.0
    %949 = vmatpush.msra.mxu0 0.0
    %950 = vmatpush.msra.mxu0 0.0
    %951 = vmatpush.msra.mxu0 0.0
    %952 = vmatpush.msra.mxu0 0.0
    %953 = vmatpush.msra.mxu0 0.0
    %954 = vmatpush.msra.mxu0 0.0
    %955 = vmatpush.msra.mxu0 0.0
    %956 = vmatpush.msra.mxu0 0.0
    %957 = vmatpush.msra.mxu0 0.0
    %958 = vmatpush.msra.mxu0 0.0
    %959 = vmatpush.msra.mxu0 0.0
    %960 = vmatpush.msra.mxu0 0.0
    %961 = vmatpush.msra.mxu0 %v938
    %962 = vmatpush.msra.mxu0 %v936
    %963 = vmatmul.f32.gmra.mxu0 %v942
    %v964 = vpop.f32.mrf.mxu0
    %v965 = vadd.f32 0.0, %v964
    %966 = vmatmul.f32.gmra.mxu0 %v945
    %v967 = vpop.f32.mrf.mxu0
    %v968 = vadd.f32 0.0, %v967
    %969 = vdwg.mxu0
    %970 = vrot.lane.b32.xlu0 %v269, 64
    %v971 = vpop.permute.xlu0 %970
    %972 = vrot.lane.b32.xlu0 %v272, 64
    %v973 = vpop.permute.xlu0 %972
    %v977 = vsel %vm350, %v933, 0
    %v980 = vsel %vm350, %v934, 0
    %982 = vmatpush.msra.mxu0 0.0
    %983 = vmatpush.msra.mxu0 0.0
    %984 = vmatpush.msra.mxu0 0.0
    %985 = vmatpush.msra.mxu0 0.0
    %986 = vmatpush.msra.mxu0 0.0
    %987 = vmatpush.msra.mxu0 0.0
    %988 = vmatpush.msra.mxu0 0.0
    %989 = vmatpush.msra.mxu0 0.0
    %990 = vmatpush.msra.mxu0 0.0
    %991 = vmatpush.msra.mxu0 0.0
    %992 = vmatpush.msra.mxu0 0.0
    %993 = vmatpush.msra.mxu0 0.0
    %994 = vmatpush.msra.mxu0 0.0
    %995 = vmatpush.msra.mxu0 0.0
    %996 = vmatpush.msra.mxu0 %v973
    %997 = vmatpush.msra.mxu0 %v971
    %998 = vmatmul.f32.gmra.mxu0 %v977
    %v999 = vpop.f32.mrf.mxu0
    %v1000 = vadd.f32 0.0, %v999
    %1001 = vmatmul.f32.gmra.mxu0 %v980
    %v1002 = vpop.f32.mrf.mxu0
    %v1003 = vadd.f32 0.0, %v1002
    %1004 = vdwg.mxu0
    %1005 = vrot.lane.b32.xlu0 %v205, 32
    %v1006 = vpop.permute.xlu0 %1005
    %1007 = vrot.lane.b32.xlu0 %v208, 32
    %v1008 = vpop.permute.xlu0 %1007
    %1009 = vrot.lane.b32.xlu0 %v234, 32
    %v1010 = vpop.permute.xlu0 %1009
    %1011 = vrot.lane.b32.xlu0 %v237, 32
    %v1012 = vpop.permute.xlu0 %1011
    %v1013 = vsel %vm275, %v1006, 0
    %v1015 = vsel %vm275, %v1008, 0
    %v1017 = vsel %vm275, %v1010, 0
    %v1019 = vsel %vm275, %v1012, 0
    %1021 = vmatpush.xpose.msra.mxu0 0.0
    %1022 = vmatpush.xpose.msra.mxu0 0.0
    %1023 = vmatpush.xpose.msra.mxu0 0.0
    %1024 = vmatpush.xpose.msra.mxu0 0.0
    %1025 = vmatpush.xpose.msra.mxu0 0.0
    %1026 = vmatpush.xpose.msra.mxu0 0.0
    %1027 = vmatpush.xpose.msra.mxu0 0.0
    %1028 = vmatpush.xpose.msra.mxu0 0.0
    %1029 = vmatpush.xpose.msra.mxu0 0.0
    %1030 = vmatpush.xpose.msra.mxu0 0.0
    %1031 = vmatpush.xpose.msra.mxu0 0.0
    %1032 = vmatpush.xpose.msra.mxu0 0.0
    %1033 = vmatpush.xpose.msra.mxu0 0.0
    %1034 = vmatpush.xpose.msra.mxu0 0.0
    %1035 = vmatpush.xpose.msra.mxu0 %v1019
    %1036 = vmatpush.xpose.msra.mxu0 %v1017
    %1037 = vmatmul.f32.gmra.mxu0 %v1013
    %v1038 = vpop.f32.mrf.mxu0
    %v1039 = vadd.f32 0.0, %v1038
    %1040 = vmatmul.f32.gmra.mxu0 %v1015
    %v1041 = vpop.f32.mrf.mxu0
    %v1042 = vadd.f32 0.0, %v1041
    %1043 = vdwg.mxu0
    %1044 = vrot.lane.b32.xlu0 %v211, 32
    %v1045 = vpop.permute.xlu0 %1044
    %1046 = vrot.lane.b32.xlu0 %v214, 32
    %v1047 = vpop.permute.xlu0 %1046
    %1048 = vrot.lane.b32.xlu0 %v240, 32
    %v1049 = vpop.permute.xlu0 %1048
    %1050 = vrot.lane.b32.xlu0 %v243, 32
    %v1051 = vpop.permute.xlu0 %1050
    %v1052 = vsel %vm275, %v1045, 0
    %v1054 = vsel %vm275, %v1047, 0
    %v1056 = vsel %vm275, %v1049, 0
    %v1058 = vsel %vm275, %v1051, 0
    %1060 = vmatpush.xpose.msra.mxu0 0.0
    %1061 = vmatpush.xpose.msra.mxu0 0.0
    %1062 = vmatpush.xpose.msra.mxu0 0.0
    %1063 = vmatpush.xpose.msra.mxu0 0.0
    %1064 = vmatpush.xpose.msra.mxu0 0.0
    %1065 = vmatpush.xpose.msra.mxu0 0.0
    %1066 = vmatpush.xpose.msra.mxu0 0.0
    %1067 = vmatpush.xpose.msra.mxu0 0.0
    %1068 = vmatpush.xpose.msra.mxu0 0.0
    %1069 = vmatpush.xpose.msra.mxu0 0.0
    %1070 = vmatpush.xpose.msra.mxu0 0.0
    %1071 = vmatpush.xpose.msra.mxu0 0.0
    %1072 = vmatpush.xpose.msra.mxu0 0.0
    %1073 = vmatpush.xpose.msra.mxu0 0.0
    %1074 = vmatpush.xpose.msra.mxu0 %v1058
    %1075 = vmatpush.xpose.msra.mxu0 %v1056
    %1076 = vmatmul.f32.gmra.mxu0 %v1052
    %v1077 = vpop.f32.mrf.mxu0
    %v1078 = vadd.f32 0.0, %v1077
    %1079 = vmatmul.f32.gmra.mxu0 %v1054
    %v1080 = vpop.f32.mrf.mxu0
    %v1081 = vadd.f32 0.0, %v1080
    %1082 = vdwg.mxu0
    %v1083 = vmul.f32 %v1039, 0.17677669
    %v1084 = vmul.f32 %v1042, 0.17677669
    %v1085 = vmul.f32 %v1078, 0.17677669
    %v1086 = vmul.f32 %v1081, 0.17677669
    %v1087 = vsel %vm350, %v1083, -inf
    %1088 = vmax.xlane.f32.xlu0 %v1087
    %v1089 = vpop.xlane.xlu0 %1088
    %v1090 = vsel %vm350, %v1084, -inf
    %1091 = vmax.xlane.f32.xlu0 %v1090
    %v1092 = vpop.xlane.xlu0 %1091
    %v1093 = vsel %vm350, %v1085, -inf
    %1094 = vmax.xlane.f32.xlu0 %v1093
    %v1095 = vpop.xlane.xlu0 %1094
    %v1096 = vsel %vm350, %v1086, -inf
    %1097 = vmax.xlane.f32.xlu0 %v1096
    %v1098 = vpop.xlane.xlu0 %1097
    %v1099 = vsub.f32 %v1083, %v1089
    %v1100 = vsub.f32 %v1084, %v1092
    %v1101 = vsub.f32 %v1085, %v1095
    %v1102 = vsub.f32 %v1086, %v1098
    %v1103 = vmul.f32 %v1099, 1.442695
    %v1104 = vpow.pop %v1103
    %v1105 = vmul.f32 %v1100, 1.442695
    %v1106 = vpow.pop %v1105
    %v1107 = vmul.f32 %v1101, 1.442695
    %v1108 = vpow.pop %v1107
    %v1109 = vmul.f32 %v1102, 1.442695
    %v1110 = vpow.pop %v1109
    %v1111 = vsel %vm350, %v1104, 0.0
    %1112 = vadd.xlane.f32.xlu0 %v1111
    %v1113 = vpop.xlane.xlu0 %1112
    %v1114 = vsel %vm350, %v1106, 0.0
    %1115 = vadd.xlane.f32.xlu0 %v1114
    %v1116 = vpop.xlane.xlu0 %1115
    %v1117 = vsel %vm350, %v1108, 0.0
    %1118 = vadd.xlane.f32.xlu0 %v1117
    %v1119 = vpop.xlane.xlu0 %1118
    %v1120 = vsel %vm350, %v1110, 0.0
    %1121 = vadd.xlane.f32.xlu0 %v1120
    %v1122 = vpop.xlane.xlu0 %1121
    %v1123 = vrcp.pop %v1113
    %v1124 = vmul.f32 %v1113, %v1123
    %v1125 = vsub.f32 1.0, %v1124
    %v1126 = vmul.f32 %v1123, %v1125
    %v1127 = vadd.f32 %v1123, %v1126
    %vm1128 = vweird.f32 %v1113
    %vm1129 = vweird.f32 %v1123
    %vm1130 = vmor %vm1128, %vm1129
    %v1131 = vsel %vm1130, %v1123, %v1127
    %v1132 = vand.u32 2147483647, %v1113
    %vm1133 = vcmp.eq.f32.partialorder %v1132, 8.507059e+37
    %v1134 = vand.u32 %v1113, 2147483648
    %v1135 = vor.u32 1.1754944e-38, %v1134
    %v1136 = vsel %vm1133, %v1135, %v1131
    %v1137 = vrcp.pop %v1116
    %v1138 = vmul.f32 %v1116, %v1137
    %v1139 = vsub.f32 1.0, %v1138
    %v1140 = vmul.f32 %v1137, %v1139
    %v1141 = vadd.f32 %v1137, %v1140
    %vm1142 = vweird.f32 %v1116
    %vm1143 = vweird.f32 %v1137
    %vm1144 = vmor %vm1142, %vm1143
    %v1145 = vsel %vm1144, %v1137, %v1141
    %v1146 = vand.u32 2147483647, %v1116
    %vm1147 = vcmp.eq.f32.partialorder %v1146, 8.507059e+37
    %v1148 = vand.u32 %v1116, 2147483648
    %v1149 = vor.u32 1.1754944e-38, %v1148
    %v1150 = vsel %vm1147, %v1149, %v1145
    %v1151 = vrcp.pop %v1119
    %v1152 = vmul.f32 %v1119, %v1151
    %v1153 = vsub.f32 1.0, %v1152
    %v1154 = vmul.f32 %v1151, %v1153
    %v1155 = vadd.f32 %v1151, %v1154
    %vm1156 = vweird.f32 %v1119
    %vm1157 = vweird.f32 %v1151
    %vm1158 = vmor %vm1156, %vm1157
    %v1159 = vsel %vm1158, %v1151, %v1155
    %v1160 = vand.u32 2147483647, %v1119
    %vm1161 = vcmp.eq.f32.partialorder %v1160, 8.507059e+37
    %v1162 = vand.u32 %v1119, 2147483648
    %v1163 = vor.u32 1.1754944e-38, %v1162
    %v1164 = vsel %vm1161, %v1163, %v1159
    %v1165 = vrcp.pop %v1122
    %v1166 = vmul.f32 %v1122, %v1165
    %v1167 = vsub.f32 1.0, %v1166
    %v1168 = vmul.f32 %v1165, %v1167
    %v1169 = vadd.f32 %v1165, %v1168
    %vm1170 = vweird.f32 %v1122
    %vm1171 = vweird.f32 %v1165
    %vm1172 = vmor %vm1170, %vm1171
    %v1173 = vsel %vm1172, %v1165, %v1169
    %v1174 = vand.u32 2147483647, %v1122
    %vm1175 = vcmp.eq.f32.partialorder %v1174, 8.507059e+37
    %v1176 = vand.u32 %v1122, 2147483648
    %v1177 = vor.u32 1.1754944e-38, %v1176
    %v1178 = vsel %vm1175, %v1177, %v1173
    %v1179 = vmul.f32 %v1104, %v1136
    %v1180 = vmul.f32 %v1106, %v1150
    %v1181 = vmul.f32 %v1108, %v1164
    %v1182 = vmul.f32 %v1110, %v1178
    %1183 = vrot.lane.b32.xlu0 %v263, 32
    %v1184 = vpop.permute.xlu0 %1183
    %1185 = vrot.lane.b32.xlu0 %v266, 32
    %v1186 = vpop.permute.xlu0 %1185
    %v1190 = vsel %vm350, %v1179, 0
    %v1193 = vsel %vm350, %v1180, 0
    %1195 = vmatpush.msra.mxu0 0.0
    %1196 = vmatpush.msra.mxu0 0.0
    %1197 = vmatpush.msra.mxu0 0.0
    %1198 = vmatpush.msra.mxu0 0.0
    %1199 = vmatpush.msra.mxu0 0.0
    %1200 = vmatpush.msra.mxu0 0.0
    %1201 = vmatpush.msra.mxu0 0.0
    %1202 = vmatpush.msra.mxu0 0.0
    %1203 = vmatpush.msra.mxu0 0.0
    %1204 = vmatpush.msra.mxu0 0.0
    %1205 = vmatpush.msra.mxu0 0.0
    %1206 = vmatpush.msra.mxu0 0.0
    %1207 = vmatpush.msra.mxu0 0.0
    %1208 = vmatpush.msra.mxu0 0.0
    %1209 = vmatpush.msra.mxu0 %v1186
    %1210 = vmatpush.msra.mxu0 %v1184
    %1211 = vmatmul.f32.gmra.mxu0 %v1190
    %v1212 = vpop.f32.mrf.mxu0
    %v1213 = vadd.f32 0.0, %v1212
    %1214 = vmatmul.f32.gmra.mxu0 %v1193
    %v1215 = vpop.f32.mrf.mxu0
    %v1216 = vadd.f32 0.0, %v1215
    %1217 = vdwg.mxu0
    %1218 = vrot.lane.b32.xlu0 %v269, 32
    %v1219 = vpop.permute.xlu0 %1218
    %1220 = vrot.lane.b32.xlu0 %v272, 32
    %v1221 = vpop.permute.xlu0 %1220
    %v1225 = vsel %vm350, %v1181, 0
    %v1228 = vsel %vm350, %v1182, 0
    %1230 = vmatpush.msra.mxu0 0.0
    %1231 = vmatpush.msra.mxu0 0.0
    %1232 = vmatpush.msra.mxu0 0.0
    %1233 = vmatpush.msra.mxu0 0.0
    %1234 = vmatpush.msra.mxu0 0.0
    %1235 = vmatpush.msra.mxu0 0.0
    %1236 = vmatpush.msra.mxu0 0.0
    %1237 = vmatpush.msra.mxu0 0.0
    %1238 = vmatpush.msra.mxu0 0.0
    %1239 = vmatpush.msra.mxu0 0.0
    %1240 = vmatpush.msra.mxu0 0.0
    %1241 = vmatpush.msra.mxu0 0.0
    %1242 = vmatpush.msra.mxu0 0.0
    %1243 = vmatpush.msra.mxu0 0.0
    %1244 = vmatpush.msra.mxu0 %v1221
    %1245 = vmatpush.msra.mxu0 %v1219
    %1246 = vmatmul.f32.gmra.mxu0 %v1225
    %v1247 = vpop.f32.mrf.mxu0
    %v1248 = vadd.f32 0.0, %v1247
    %1249 = vmatmul.f32.gmra.mxu0 %v1228
    %v1250 = vpop.f32.mrf.mxu0
    %v1251 = vadd.f32 0.0, %v1250
    %1252 = vdwg.mxu0
    %1257 = vrot.lane.b32.xlu0 %v715, 32
    %v1258 = vpop.permute.xlu0 %1257
    %1259 = vrot.lane.b32.xlu0 %v718, 32
    %v1260 = vpop.permute.xlu0 %1259
    %1261 = vrot.lane.b32.xlu0 %v752, 32
    %v1262 = vpop.permute.xlu0 %1261
    %1263 = vrot.lane.b32.xlu0 %v755, 32
    %v1264 = vpop.permute.xlu0 %1263
    %1273 = vrot.lane.b32.xlu0 %v965, 64
    %v1274 = vpop.permute.xlu0 %1273
    %1275 = vrot.lane.b32.xlu0 %v968, 64
    %v1276 = vpop.permute.xlu0 %1275
    %1277 = vrot.lane.b32.xlu0 %v1000, 64
    %v1278 = vpop.permute.xlu0 %1277
    %1279 = vrot.lane.b32.xlu0 %v1003, 64
    %v1280 = vpop.permute.xlu0 %1279
    %1289 = vrot.lane.b32.xlu0 %v1213, 96
    %v1290 = vpop.permute.xlu0 %1289
    %1291 = vrot.lane.b32.xlu0 %v1216, 96
    %v1292 = vpop.permute.xlu0 %1291
    %1293 = vrot.lane.b32.xlu0 %v1248, 96
    %v1294 = vpop.permute.xlu0 %1293
    %1295 = vrot.lane.b32.xlu0 %v1251, 96
    %v1296 = vpop.permute.xlu0 %1295
    %v1301 = vsel %vm275, %v471, %v1258
    %v1302 = vsel %vm275, %v474, %v1260
    %v1303 = vsel %vm275, %v500, %v1262
    %v1304 = vsel %vm275, %v503, %v1264
    %vm1305 = vcmask 523264
    %v1306 = vsel %vm1305, %v1301, %v1274
    %v1307 = vsel %vm1305, %v1302, %v1276
    %v1308 = vsel %vm1305, %v1303, %v1278
    %v1309 = vsel %vm1305, %v1304, %v1280
    %vm1310 = vcmask 785408
    %v1311 = vsel %vm1310, %v1306, %v1290
    %v1312 = vsel %vm1310, %v1307, %v1292
    %v1313 = vsel %vm1310, %v1308, %v1294
    %v1314 = vsel %vm1310, %v1309, %v1296
    %v1315 = vld [vmem:[#allocation11] sm:$0xff]
    %v1316 = vld [vmem:[#allocation11 + $0x8] sm:$0xff]
    %v1317 = vld [vmem:[#allocation11 + $0x10] sm:$0xff]
    %v1318 = vld [vmem:[#allocation11 + $0x18] sm:$0xff]
    %v1319 = vld [vmem:[#allocation11 + $0x20] sm:$0xff]
    %v1320 = vld [vmem:[#allocation11 + $0x28] sm:$0xff]
    %v1321 = vld [vmem:[#allocation11 + $0x30] sm:$0xff]
    %v1322 = vld [vmem:[#allocation11 + $0x38] sm:$0xff]
    %v1323 = vld [vmem:[#allocation11 + $0x40] sm:$0xff]
    %v1324 = vld [vmem:[#allocation11 + $0x48] sm:$0xff]
    %v1325 = vld [vmem:[#allocation11 + $0x50] sm:$0xff]
    %v1326 = vld [vmem:[#allocation11 + $0x58] sm:$0xff]
    %v1327 = vld [vmem:[#allocation11 + $0x60] sm:$0xff]
    %v1328 = vld [vmem:[#allocation11 + $0x68] sm:$0xff]
    %v1329 = vld [vmem:[#allocation11 + $0x70] sm:$0xff]
    %v1330 = vld [vmem:[#allocation11 + $0x78] sm:$0xff]
    %v1331 = vperm.slane %v274, 0
    %1332 = vmatpush.msra.mxu0 %v1330
    %1333 = vmatpush.msra.mxu0 %v1329
    %1334 = vmatpush.msra.mxu0 %v1328
    %1335 = vmatpush.msra.mxu0 %v1327
    %1336 = vmatpush.msra.mxu0 %v1326
    %1337 = vmatpush.msra.mxu0 %v1325
    %1338 = vmatpush.msra.mxu0 %v1324
    %1339 = vmatpush.msra.mxu0 %v1323
    %1340 = vmatpush.msra.mxu0 %v1322
    %1341 = vmatpush.msra.mxu0 %v1321
    %1342 = vmatpush.msra.mxu0 %v1320
    %1343 = vmatpush.msra.mxu0 %v1319
    %1344 = vmatpush.msra.mxu0 %v1318
    %1345 = vmatpush.msra.mxu0 %v1317
    %1346 = vmatpush.msra.mxu0 %v1316
    %1347 = vmatpush.msra.mxu0 %v1315
    %1348 = vmatmul.f32.gmra.mxu0 %v1311
    %v1349 = vpop.f32.mrf.mxu0
    %v1350 = vadd.f32 %v1331, %v1349
    %1351 = vmatmul.f32.gmra.mxu0 %v1312
    %v1352 = vpop.f32.mrf.mxu0
    %v1353 = vadd.f32 %v1331, %v1352
    %1354 = vmatmul.f32.gmra.mxu0 %v1313
    %v1355 = vpop.f32.mrf.mxu0
    %v1356 = vadd.f32 %v1331, %v1355
    %1357 = vmatmul.f32.gmra.mxu0 %v1314
    %v1358 = vpop.f32.mrf.mxu0
    %v1359 = vadd.f32 %v1331, %v1358
    %1360 = vdwg.mxu0
    %v1361 = vadd.f32 %v127, %v1350
    %v1362 = vadd.f32 %v128, %v1353
    %v1363 = vadd.f32 %v129, %v1356
    %v1364 = vadd.f32 %v130, %v1359
    %1365 = vadd.xlane.f32.xlu0 %v1361
    %v1366 = vpop.xlane.xlu0 %1365
    %1367 = vadd.xlane.f32.xlu0 %v1362
    %v1368 = vpop.xlane.xlu0 %1367
    %1369 = vadd.xlane.f32.xlu0 %v1363
    %v1370 = vpop.xlane.xlu0 %1369
    %1371 = vadd.xlane.f32.xlu0 %v1364
    %v1372 = vpop.xlane.xlu0 %1371
    %v1373 = vrcp.pop 128.0
    %v1374 = vmul.f32 128.0, %v1373
    %v1375 = vsub.f32 1.0, %v1374
    %v1376 = vmul.f32 %v1373, %v1375
    %v1377 = vadd.f32 %v1373, %v1376
    %vm1378 = vweird.f32 %v1373
    %v1379 = vsel %vm1378, %v1373, %v1377
    %v1380 = vmul.f32 %v1366, %v1379
    %v1381 = vmul.f32 %v1368, %v1379
    %v1382 = vmul.f32 %v1370, %v1379
    %v1383 = vmul.f32 %v1372, %v1379
    %v1384 = vsub.f32 %v1361, %v1380
    %v1385 = vsub.f32 %v1362, %v1381
    %v1386 = vsub.f32 %v1363, %v1382
    %v1387 = vsub.f32 %v1364, %v1383
    %v1388 = vmul.f32 %v1384, %v1384
    %v1389 = vmul.f32 %v1385, %v1385
    %v1390 = vmul.f32 %v1386, %v1386
    %v1391 = vmul.f32 %v1387, %v1387
    %1392 = vadd.xlane.f32.xlu0 %v1388
    %v1393 = vpop.xlane.xlu0 %1392
    %1394 = vadd.xlane.f32.xlu0 %v1389
    %v1395 = vpop.xlane.xlu0 %1394
    %1396 = vadd.xlane.f32.xlu0 %v1390
    %v1397 = vpop.xlane.xlu0 %1396
    %1398 = vadd.xlane.f32.xlu0 %v1391
    %v1399 = vpop.xlane.xlu0 %1398
    %v1400 = vmul.f32 %v1393, %v1379
    %v1401 = vmul.f32 %v1395, %v1379
    %v1402 = vmul.f32 %v1397, %v1379
    %v1403 = vmul.f32 %v1399, %v1379
    %v1404 = vadd.f32 %v1400, 1e-05
    %v1405 = vadd.f32 %v1401, 1e-05
    %v1406 = vadd.f32 %v1402, 1e-05
    %v1407 = vadd.f32 %v1403, 1e-05
    %v1408 = vrsqrt.pop %v1404
    %v1409 = vmul.f32 %v1408, %v1404
    %v1410 = vmul.f32 %v1409, %v1408
    %v1411 = vmul.f32 0.5, %v1410
    %v1412 = vsub.f32 1.5, %v1411
    %v1413 = vmul.f32 %v1408, %v1412
    %vm1414 = vweird.f32 %v1404
    %vm1415 = vweird.f32 %v1408
    %vm1416 = vmor %vm1414, %vm1415
    %v1417 = vsel %vm1416, %v1408, %v1413
    %v1418 = vrsqrt.pop %v1405
    %v1419 = vmul.f32 %v1418, %v1405
    %v1420 = vmul.f32 %v1419, %v1418
    %v1421 = vmul.f32 0.5, %v1420
    %v1422 = vsub.f32 1.5, %v1421
    %v1423 = vmul.f32 %v1418, %v1422
    %vm1424 = vweird.f32 %v1405
    %vm1425 = vweird.f32 %v1418
    %vm1426 = vmor %vm1424, %vm1425
    %v1427 = vsel %vm1426, %v1418, %v1423
    %v1428 = vrsqrt.pop %v1406
    %v1429 = vmul.f32 %v1428, %v1406
    %v1430 = vmul.f32 %v1429, %v1428
    %v1431 = vmul.f32 0.5, %v1430
    %v1432 = vsub.f32 1.5, %v1431
    %v1433 = vmul.f32 %v1428, %v1432
    %vm1434 = vweird.f32 %v1406
    %vm1435 = vweird.f32 %v1428
    %vm1436 = vmor %vm1434, %vm1435
    %v1437 = vsel %vm1436, %v1428, %v1433
    %v1438 = vrsqrt.pop %v1407
    %v1439 = vmul.f32 %v1438, %v1407
    %v1440 = vmul.f32 %v1439, %v1438
    %v1441 = vmul.f32 0.5, %v1440
    %v1442 = vsub.f32 1.5, %v1441
    %v1443 = vmul.f32 %v1438, %v1442
    %vm1444 = vweird.f32 %v1407
    %vm1445 = vweird.f32 %v1438
    %vm1446 = vmor %vm1444, %vm1445
    %v1447 = vsel %vm1446, %v1438, %v1443
    %v1448 = vmul.f32 %v1384, %v1417
    %v1449 = vmul.f32 %v1385, %v1427
    %v1450 = vmul.f32 %v1386, %v1437
    %v1451 = vmul.f32 %v1387, %v1447
    %v1452 = vperm.slane %v274, 1
    %v1453 = vmul.f32 %v1448, %v1452
    %v1454 = vmul.f32 %v1449, %v1452
    %v1455 = vmul.f32 %v1450, %v1452
    %v1456 = vmul.f32 %v1451, %v1452
    %v1457 = vperm.slane %v274, 2
    %v1458 = vadd.f32 %v1453, %v1457
    %v1459 = vadd.f32 %v1454, %v1457
    %v1460 = vadd.f32 %v1455, %v1457
    %v1461 = vadd.f32 %v1456, %v1457
    %s1462 = smul.u32 8, 16
    %s1463 = smul.u32 %s1462, 4
    %s1464 = sshll.u32 %s1463, 4
    %1465 = dma.done [#allocation4], %s1464
    %s1466 = smul.u32 512, 1
    %s1467 = sshll.u32 %s1466, 4
    %1468 = dma.done %s113, %s1467
    %v1469 = vld [vmem:[#allocation2] sm:$0xff]
    %v1470 = vld [vmem:[#allocation2 + $0x8] sm:$0xff]
    %v1471 = vld [vmem:[#allocation2 + $0x10] sm:$0xff]
    %v1472 = vld [vmem:[#allocation2 + $0x18] sm:$0xff]
    %v1473 = vld [vmem:[#allocation2 + $0x20] sm:$0xff]
    %v1474 = vld [vmem:[#allocation2 + $0x28] sm:$0xff]
    %v1475 = vld [vmem:[#allocation2 + $0x30] sm:$0xff]
    %v1476 = vld [vmem:[#allocation2 + $0x38] sm:$0xff]
    %v1477 = vld [vmem:[#allocation2 + $0x40] sm:$0xff]
    %v1478 = vld [vmem:[#allocation2 + $0x48] sm:$0xff]
    %v1479 = vld [vmem:[#allocation2 + $0x50] sm:$0xff]
    %v1480 = vld [vmem:[#allocation2 + $0x58] sm:$0xff]
    %v1481 = vld [vmem:[#allocation2 + $0x60] sm:$0xff]
    %v1482 = vld [vmem:[#allocation2 + $0x68] sm:$0xff]
    %v1483 = vld [vmem:[#allocation2 + $0x70] sm:$0xff]
    %v1484 = vld [vmem:[#allocation2 + $0x78] sm:$0xff]
    %v1485 = vld [vmem:[#allocation2 + $0x80] sm:$0xff]
    %v1486 = vld [vmem:[#allocation2 + $0x88] sm:$0xff]
    %v1487 = vld [vmem:[#allocation2 + $0x90] sm:$0xff]
    %v1488 = vld [vmem:[#allocation2 + $0x98] sm:$0xff]
    %v1489 = vld [vmem:[#allocation2 + $0xa0] sm:$0xff]
    %v1490 = vld [vmem:[#allocation2 + $0xa8] sm:$0xff]
    %v1491 = vld [vmem:[#allocation2 + $0xb0] sm:$0xff]
    %v1492 = vld [vmem:[#allocation2 + $0xb8] sm:$0xff]
    %v1493 = vld [vmem:[#allocation2 + $0xc0] sm:$0xff]
    %v1494 = vld [vmem:[#allocation2 + $0xc8] sm:$0xff]
    %v1495 = vld [vmem:[#allocation2 + $0xd0] sm:$0xff]
    %v1496 = vld [vmem:[#allocation2 + $0xd8] sm:$0xff]
    %v1497 = vld [vmem:[#allocation2 + $0xe0] sm:$0xff]
    %v1498 = vld [vmem:[#allocation2 + $0xe8] sm:$0xff]
    %v1499 = vld [vmem:[#allocation2 + $0xf0] sm:$0xff]
    %v1500 = vld [vmem:[#allocation2 + $0xf8] sm:$0xff]
    %v1501 = vld [vmem:[#allocation2 + $0x100] sm:$0xff]
    %v1502 = vld [vmem:[#allocation2 + $0x108] sm:$0xff]
    %v1503 = vld [vmem:[#allocation2 + $0x110] sm:$0xff]
    %v1504 = vld [vmem:[#allocation2 + $0x118] sm:$0xff]
    %v1505 = vld [vmem:[#allocation2 + $0x120] sm:$0xff]
    %v1506 = vld [vmem:[#allocation2 + $0x128] sm:$0xff]
    %v1507 = vld [vmem:[#allocation2 + $0x130] sm:$0xff]
    %v1508 = vld [vmem:[#allocation2 + $0x138] sm:$0xff]
    %v1509 = vld [vmem:[#allocation2 + $0x140] sm:$0xff]
    %v1510 = vld [vmem:[#allocation2 + $0x148] sm:$0xff]
    %v1511 = vld [vmem:[#allocation2 + $0x150] sm:$0xff]
    %v1512 = vld [vmem:[#allocation2 + $0x158] sm:$0xff]
    %v1513 = vld [vmem:[#allocation2 + $0x160] sm:$0xff]
    %v1514 = vld [vmem:[#allocation2 + $0x168] sm:$0xff]
    %v1515 = vld [vmem:[#allocation2 + $0x170] sm:$0xff]
    %v1516 = vld [vmem:[#allocation2 + $0x178] sm:$0xff]
    %v1517 = vld [vmem:[#allocation2 + $0x180] sm:$0xff]
    %v1518 = vld [vmem:[#allocation2 + $0x188] sm:$0xff]
    %v1519 = vld [vmem:[#allocation2 + $0x190] sm:$0xff]
    %v1520 = vld [vmem:[#allocation2 + $0x198] sm:$0xff]
    %v1521 = vld [vmem:[#allocation2 + $0x1a0] sm:$0xff]
    %v1522 = vld [vmem:[#allocation2 + $0x1a8] sm:$0xff]
    %v1523 = vld [vmem:[#allocation2 + $0x1b0] sm:$0xff]
    %v1524 = vld [vmem:[#allocation2 + $0x1b8] sm:$0xff]
    %v1525 = vld [vmem:[#allocation2 + $0x1c0] sm:$0xff]
    %v1526 = vld [vmem:[#allocation2 + $0x1c8] sm:$0xff]
    %v1527 = vld [vmem:[#allocation2 + $0x1d0] sm:$0xff]
    %v1528 = vld [vmem:[#allocation2 + $0x1d8] sm:$0xff]
    %v1529 = vld [vmem:[#allocation2 + $0x1e0] sm:$0xff]
    %v1530 = vld [vmem:[#allocation2 + $0x1e8] sm:$0xff]
    %v1531 = vld [vmem:[#allocation2 + $0x1f0] sm:$0xff]
    %v1532 = vld [vmem:[#allocation2 + $0x1f8] sm:$0xff]
    %v1533 = vld [vmem:[%s5] sm:$0xf]
    %v1535 = vperm.slane %v1533, 0
    %v1536 = vperm.slane %v1533, 1
    %v1537 = vperm.slane %v1533, 2
    %v1538 = vperm.slane %v1533, 3
    %1543 = vmatpush.msra.mxu0 %v1529
    %1544 = vmatpush.msra.mxu0 %v1525
    %1545 = vmatpush.msra.mxu0 %v1521
    %1546 = vmatpush.msra.mxu0 %v1517
    %1547 = vmatpush.msra.mxu0 %v1513
    %1548 = vmatpush.msra.mxu0 %v1509
    %1549 = vmatpush.msra.mxu0 %v1505
    %1550 = vmatpush.msra.mxu0 %v1501
    %1551 = vmatpush.msra.mxu0 %v1497
    %1552 = vmatpush.msra.mxu0 %v1493
    %1553 = vmatpush.msra.mxu0 %v1489
    %1554 = vmatpush.msra.mxu0 %v1485
    %1555 = vmatpush.msra.mxu0 %v1481
    %1556 = vmatpush.msra.mxu0 %v1477
    %1557 = vmatpush.msra.mxu0 %v1473
    %1558 = vmatpush.msra.mxu0 %v1469
    %1559 = vmatmul.f32.gmra.mxu0 %v1458
    %v1560 = vpop.f32.mrf.mxu0
    %v1561 = vadd.f32 %v1535, %v1560
    %1562 = vmatmul.f32.gmra.mxu0 %v1459
    %v1563 = vpop.f32.mrf.mxu0
    %v1564 = vadd.f32 %v1535, %v1563
    %1565 = vmatmul.f32.gmra.mxu0 %v1460
    %v1566 = vpop.f32.mrf.mxu0
    %v1567 = vadd.f32 %v1535, %v1566
    %1568 = vmatmul.f32.gmra.mxu0 %v1461
    %v1569 = vpop.f32.mrf.mxu0
    %v1570 = vadd.f32 %v1535, %v1569
    %1571 = vdwg.mxu0
    %1572 = vmatpush.msra.mxu0 %v1530
    %1573 = vmatpush.msra.mxu0 %v1526
    %1574 = vmatpush.msra.mxu0 %v1522
    %1575 = vmatpush.msra.mxu0 %v1518
    %1576 = vmatpush.msra.mxu0 %v1514
    %1577 = vmatpush.msra.mxu0 %v1510
    %1578 = vmatpush.msra.mxu0 %v1506
    %1579 = vmatpush.msra.mxu0 %v1502
    %1580 = vmatpush.msra.mxu0 %v1498
    %1581 = vmatpush.msra.mxu0 %v1494
    %1582 = vmatpush.msra.mxu0 %v1490
    %1583 = vmatpush.msra.mxu0 %v1486
    %1584 = vmatpush.msra.mxu0 %v1482
    %1585 = vmatpush.msra.mxu0 %v1478
    %1586 = vmatpush.msra.mxu0 %v1474
    %1587 = vmatpush.msra.mxu0 %v1470
    %1588 = vmatmul.f32.gmra.mxu0 %v1458
    %v1589 = vpop.f32.mrf.mxu0
    %v1590 = vadd.f32 %v1536, %v1589
    %1591 = vmatmul.f32.gmra.mxu0 %v1459
    %v1592 = vpop.f32.mrf.mxu0
    %v1593 = vadd.f32 %v1536, %v1592
    %1594 = vmatmul.f32.gmra.mxu0 %v1460
    %v1595 = vpop.f32.mrf.mxu0
    %v1596 = vadd.f32 %v1536, %v1595
    %1597 = vmatmul.f32.gmra.mxu0 %v1461
    %v1598 = vpop.f32.mrf.mxu0
    %v1599 = vadd.f32 %v1536, %v1598
    %1600 = vdwg.mxu0
    %1601 = vmatpush.msra.mxu0 %v1531
    %1602 = vmatpush.msra.mxu0 %v1527
    %1603 = vmatpush.msra.mxu0 %v1523
    %1604 = vmatpush.msra.mxu0 %v1519
    %1605 = vmatpush.msra.mxu0 %v1515
    %1606 = vmatpush.msra.mxu0 %v1511
    %1607 = vmatpush.msra.mxu0 %v1507
    %1608 = vmatpush.msra.mxu0 %v1503
    %1609 = vmatpush.msra.mxu0 %v1499
    %1610 = vmatpush.msra.mxu0 %v1495
    %1611 = vmatpush.msra.mxu0 %v1491
    %1612 = vmatpush.msra.mxu0 %v1487
    %1613 = vmatpush.msra.mxu0 %v1483
    %1614 = vmatpush.msra.mxu0 %v1479
    %1615 = vmatpush.msra.mxu0 %v1475
    %1616 = vmatpush.msra.mxu0 %v1471
    %1617 = vmatmul.f32.gmra.mxu0 %v1458
    %v1618 = vpop.f32.mrf.mxu0
    %v1619 = vadd.f32 %v1537, %v1618
    %1620 = vmatmul.f32.gmra.mxu0 %v1459
    %v1621 = vpop.f32.mrf.mxu0
    %v1622 = vadd.f32 %v1537, %v1621
    %1623 = vmatmul.f32.gmra.mxu0 %v1460
    %v1624 = vpop.f32.mrf.mxu0
    %v1625 = vadd.f32 %v1537, %v1624
    %1626 = vmatmul.f32.gmra.mxu0 %v1461
    %v1627 = vpop.f32.mrf.mxu0
    %v1628 = vadd.f32 %v1537, %v1627
    %1629 = vdwg.mxu0
    %1630 = vmatpush.msra.mxu0 %v1532
    %1631 = vmatpush.msra.mxu0 %v1528
    %1632 = vmatpush.msra.mxu0 %v1524
    %1633 = vmatpush.msra.mxu0 %v1520
    %1634 = vmatpush.msra.mxu0 %v1516
    %1635 = vmatpush.msra.mxu0 %v1512
    %1636 = vmatpush.msra.mxu0 %v1508
    %1637 = vmatpush.msra.mxu0 %v1504
    %1638 = vmatpush.msra.mxu0 %v1500
    %1639 = vmatpush.msra.mxu0 %v1496
    %1640 = vmatpush.msra.mxu0 %v1492
    %1641 = vmatpush.msra.mxu0 %v1488
    %1642 = vmatpush.msra.mxu0 %v1484
    %1643 = vmatpush.msra.mxu0 %v1480
    %1644 = vmatpush.msra.mxu0 %v1476
    %1645 = vmatpush.msra.mxu0 %v1472
    %1646 = vmatmul.f32.gmra.mxu0 %v1458
    %v1647 = vpop.f32.mrf.mxu0
    %v1648 = vadd.f32 %v1538, %v1647
    %1649 = vmatmul.f32.gmra.mxu0 %v1459
    %v1650 = vpop.f32.mrf.mxu0
    %v1651 = vadd.f32 %v1538, %v1650
    %1652 = vmatmul.f32.gmra.mxu0 %v1460
    %v1653 = vpop.f32.mrf.mxu0
    %v1654 = vadd.f32 %v1538, %v1653
    %1655 = vmatmul.f32.gmra.mxu0 %v1461
    %v1656 = vpop.f32.mrf.mxu0
    %v1657 = vadd.f32 %v1538, %v1656
    %1658 = vdwg.mxu0
    %v1659 = vmax.f32 %v1561, 0.0
    %v1660 = vmax.f32 %v1590, 0.0
    %v1661 = vmax.f32 %v1619, 0.0
    %v1662 = vmax.f32 %v1648, 0.0
    %v1663 = vmax.f32 %v1564, 0.0
    %v1664 = vmax.f32 %v1593, 0.0
    %v1665 = vmax.f32 %v1622, 0.0
    %v1666 = vmax.f32 %v1651, 0.0
    %v1667 = vmax.f32 %v1567, 0.0
    %v1668 = vmax.f32 %v1596, 0.0
    %v1669 = vmax.f32 %v1625, 0.0
    %v1670 = vmax.f32 %v1654, 0.0
    %v1671 = vmax.f32 %v1570, 0.0
    %v1672 = vmax.f32 %v1599, 0.0
    %v1673 = vmax.f32 %v1628, 0.0
    %v1674 = vmax.f32 %v1657, 0.0
    %v1675 = vld [vmem:[#allocation3] sm:$0xff]
    %v1676 = vld [vmem:[#allocation3 + $0x8] sm:$0xff]
    %v1677 = vld [vmem:[#allocation3 + $0x10] sm:$0xff]
    %v1678 = vld [vmem:[#allocation3 + $0x18] sm:$0xff]
    %v1679 = vld [vmem:[#allocation3 + $0x20] sm:$0xff]
    %v1680 = vld [vmem:[#allocation3 + $0x28] sm:$0xff]
    %v1681 = vld [vmem:[#allocation3 + $0x30] sm:$0xff]
    %v1682 = vld [vmem:[#allocation3 + $0x38] sm:$0xff]
    %v1683 = vld [vmem:[#allocation3 + $0x40] sm:$0xff]
    %v1684 = vld [vmem:[#allocation3 + $0x48] sm:$0xff]
    %v1685 = vld [vmem:[#allocation3 + $0x50] sm:$0xff]
    %v1686 = vld [vmem:[#allocation3 + $0x58] sm:$0xff]
    %v1687 = vld [vmem:[#allocation3 + $0x60] sm:$0xff]
    %v1688 = vld [vmem:[#allocation3 + $0x68] sm:$0xff]
    %v1689 = vld [vmem:[#allocation3 + $0x70] sm:$0xff]
    %v1690 = vld [vmem:[#allocation3 + $0x78] sm:$0xff]
    %v1691 = vld [vmem:[#allocation3 + $0x80] sm:$0xff]
    %v1692 = vld [vmem:[#allocation3 + $0x88] sm:$0xff]
    %v1693 = vld [vmem:[#allocation3 + $0x90] sm:$0xff]
    %v1694 = vld [vmem:[#allocation3 + $0x98] sm:$0xff]
    %v1695 = vld [vmem:[#allocation3 + $0xa0] sm:$0xff]
    %v1696 = vld [vmem:[#allocation3 + $0xa8] sm:$0xff]
    %v1697 = vld [vmem:[#allocation3 + $0xb0] sm:$0xff]
    %v1698 = vld [vmem:[#allocation3 + $0xb8] sm:$0xff]
    %v1699 = vld [vmem:[#allocation3 + $0xc0] sm:$0xff]
    %v1700 = vld [vmem:[#allocation3 + $0xc8] sm:$0xff]
    %v1701 = vld [vmem:[#allocation3 + $0xd0] sm:$0xff]
    %v1702 = vld [vmem:[#allocation3 + $0xd8] sm:$0xff]
    %v1703 = vld [vmem:[#allocation3 + $0xe0] sm:$0xff]
    %v1704 = vld [vmem:[#allocation3 + $0xe8] sm:$0xff]
    %v1705 = vld [vmem:[#allocation3 + $0xf0] sm:$0xff]
    %v1706 = vld [vmem:[#allocation3 + $0xf8] sm:$0xff]
    %v1707 = vld [vmem:[#allocation3 + $0x100] sm:$0xff]
    %v1708 = vld [vmem:[#allocation3 + $0x108] sm:$0xff]
    %v1709 = vld [vmem:[#allocation3 + $0x110] sm:$0xff]
    %v1710 = vld [vmem:[#allocation3 + $0x118] sm:$0xff]
    %v1711 = vld [vmem:[#allocation3 + $0x120] sm:$0xff]
    %v1712 = vld [vmem:[#allocation3 + $0x128] sm:$0xff]
    %v1713 = vld [vmem:[#allocation3 + $0x130] sm:$0xff]
    %v1714 = vld [vmem:[#allocation3 + $0x138] sm:$0xff]
    %v1715 = vld [vmem:[#allocation3 + $0x140] sm:$0xff]
    %v1716 = vld [vmem:[#allocation3 + $0x148] sm:$0xff]
    %v1717 = vld [vmem:[#allocation3 + $0x150] sm:$0xff]
    %v1718 = vld [vmem:[#allocation3 + $0x158] sm:$0xff]
    %v1719 = vld [vmem:[#allocation3 + $0x160] sm:$0xff]
    %v1720 = vld [vmem:[#allocation3 + $0x168] sm:$0xff]
    %v1721 = vld [vmem:[#allocation3 + $0x170] sm:$0xff]
    %v1722 = vld [vmem:[#allocation3 + $0x178] sm:$0xff]
    %v1723 = vld [vmem:[#allocation3 + $0x180] sm:$0xff]
    %v1724 = vld [vmem:[#allocation3 + $0x188] sm:$0xff]
    %v1725 = vld [vmem:[#allocation3 + $0x190] sm:$0xff]
    %v1726 = vld [vmem:[#allocation3 + $0x198] sm:$0xff]
    %v1727 = vld [vmem:[#allocation3 + $0x1a0] sm:$0xff]
    %v1728 = vld [vmem:[#allocation3 + $0x1a8] sm:$0xff]
    %v1729 = vld [vmem:[#allocation3 + $0x1b0] sm:$0xff]
    %v1730 = vld [vmem:[#allocation3 + $0x1b8] sm:$0xff]
    %v1731 = vld [vmem:[#allocation3 + $0x1c0] sm:$0xff]
    %v1732 = vld [vmem:[#allocation3 + $0x1c8] sm:$0xff]
    %v1733 = vld [vmem:[#allocation3 + $0x1d0] sm:$0xff]
    %v1734 = vld [vmem:[#allocation3 + $0x1d8] sm:$0xff]
    %v1735 = vld [vmem:[#allocation3 + $0x1e0] sm:$0xff]
    %v1736 = vld [vmem:[#allocation3 + $0x1e8] sm:$0xff]
    %v1737 = vld [vmem:[#allocation3 + $0x1f0] sm:$0xff]
    %v1738 = vld [vmem:[#allocation3 + $0x1f8] sm:$0xff]
    %v1739 = vperm.slane %v274, 3
    %1740 = vmatpush.msra.mxu0 %v1690
    %1741 = vmatpush.msra.mxu0 %v1689
    %1742 = vmatpush.msra.mxu0 %v1688
    %1743 = vmatpush.msra.mxu0 %v1687
    %1744 = vmatpush.msra.mxu0 %v1686
    %1745 = vmatpush.msra.mxu0 %v1685
    %1746 = vmatpush.msra.mxu0 %v1684
    %1747 = vmatpush.msra.mxu0 %v1683
    %1748 = vmatpush.msra.mxu0 %v1682
    %1749 = vmatpush.msra.mxu0 %v1681
    %1750 = vmatpush.msra.mxu0 %v1680
    %1751 = vmatpush.msra.mxu0 %v1679
    %1752 = vmatpush.msra.mxu0 %v1678
    %1753 = vmatpush.msra.mxu0 %v1677
    %1754 = vmatpush.msra.mxu0 %v1676
    %1755 = vmatpush.msra.mxu0 %v1675
    %1756 = vmatmul.f32.gmra.mxu0 %v1659
    %v1757 = vpop.f32.mrf.mxu0
    %v1758 = vadd.f32 %v1739, %v1757
    %1759 = vmatmul.f32.gmra.mxu0 %v1663
    %v1760 = vpop.f32.mrf.mxu0
    %v1761 = vadd.f32 %v1739, %v1760
    %1762 = vmatmul.f32.gmra.mxu0 %v1667
    %v1763 = vpop.f32.mrf.mxu0
    %v1764 = vadd.f32 %v1739, %v1763
    %1765 = vmatmul.f32.gmra.mxu0 %v1671
    %v1766 = vpop.f32.mrf.mxu0
    %v1767 = vadd.f32 %v1739, %v1766
    %1768 = vdwg.mxu0
    %1769 = vmatpush.msra.mxu0 %v1706
    %1770 = vmatpush.msra.mxu0 %v1705
    %1771 = vmatpush.msra.mxu0 %v1704
    %1772 = vmatpush.msra.mxu0 %v1703
    %1773 = vmatpush.msra.mxu0 %v1702
    %1774 = vmatpush.msra.mxu0 %v1701
    %1775 = vmatpush.msra.mxu0 %v1700
    %1776 = vmatpush.msra.mxu0 %v1699
    %1777 = vmatpush.msra.mxu0 %v1698
    %1778 = vmatpush.msra.mxu0 %v1697
    %1779 = vmatpush.msra.mxu0 %v1696
    %1780 = vmatpush.msra.mxu0 %v1695
    %1781 = vmatpush.msra.mxu0 %v1694
    %1782 = vmatpush.msra.mxu0 %v1693
    %1783 = vmatpush.msra.mxu0 %v1692
    %1784 = vmatpush.msra.mxu0 %v1691
    %1785 = vmatmul.f32.gmra.mxu0 %v1660
    %v1786 = vpop.f32.mrf.mxu0
    %v1787 = vadd.f32 %v1758, %v1786
    %1788 = vmatmul.f32.gmra.mxu0 %v1664
    %v1789 = vpop.f32.mrf.mxu0
    %v1790 = vadd.f32 %v1761, %v1789
    %1791 = vmatmul.f32.gmra.mxu0 %v1668
    %v1792 = vpop.f32.mrf.mxu0
    %v1793 = vadd.f32 %v1764, %v1792
    %1794 = vmatmul.f32.gmra.mxu0 %v1672
    %v1795 = vpop.f32.mrf.mxu0
    %v1796 = vadd.f32 %v1767, %v1795
    %1797 = vdwg.mxu0
    %1798 = vmatpush.msra.mxu0 %v1722
    %1799 = vmatpush.msra.mxu0 %v1721
    %1800 = vmatpush.msra.mxu0 %v1720
    %1801 = vmatpush.msra.mxu0 %v1719
    %1802 = vmatpush.msra.mxu0 %v1718
    %1803 = vmatpush.msra.mxu0 %v1717
    %1804 = vmatpush.msra.mxu0 %v1716
    %1805 = vmatpush.msra.mxu0 %v1715
    %1806 = vmatpush.msra.mxu0 %v1714
    %1807 = vmatpush.msra.mxu0 %v1713
    %1808 = vmatpush.msra.mxu0 %v1712
    %1809 = vmatpush.msra.mxu0 %v1711
    %1810 = vmatpush.msra.mxu0 %v1710
    %1811 = vmatpush.msra.mxu0 %v1709
    %1812 = vmatpush.msra.mxu0 %v1708
    %1813 = vmatpush.msra.mxu0 %v1707
    %1814 = vmatmul.f32.gmra.mxu0 %v1661
    %v1815 = vpop.f32.mrf.mxu0
    %v1816 = vadd.f32 %v1787, %v1815
    %1817 = vmatmul.f32.gmra.mxu0 %v1665
    %v1818 = vpop.f32.mrf.mxu0
    %v1819 = vadd.f32 %v1790, %v1818
    %1820 = vmatmul.f32.gmra.mxu0 %v1669
    %v1821 = vpop.f32.mrf.mxu0
    %v1822 = vadd.f32 %v1793, %v1821
    %1823 = vmatmul.f32.gmra.mxu0 %v1673
    %v1824 = vpop.f32.mrf.mxu0
    %v1825 = vadd.f32 %v1796, %v1824
    %1826 = vdwg.mxu0
    %1827 = vmatpush.msra.mxu0 %v1738
    %1828 = vmatpush.msra.mxu0 %v1737
    %1829 = vmatpush.msra.mxu0 %v1736
    %1830 = vmatpush.msra.mxu0 %v1735
    %1831 = vmatpush.msra.mxu0 %v1734
    %1832 = vmatpush.msra.mxu0 %v1733
    %1833 = vmatpush.msra.mxu0 %v1732
    %1834 = vmatpush.msra.mxu0 %v1731
    %1835 = vmatpush.msra.mxu0 %v1730
    %1836 = vmatpush.msra.mxu0 %v1729
    %1837 = vmatpush.msra.mxu0 %v1728
    %1838 = vmatpush.msra.mxu0 %v1727
    %1839 = vmatpush.msra.mxu0 %v1726
    %1840 = vmatpush.msra.mxu0 %v1725
    %1841 = vmatpush.msra.mxu0 %v1724
    %1842 = vmatpush.msra.mxu0 %v1723
    %1843 = vmatmul.f32.gmra.mxu0 %v1662
    %v1844 = vpop.f32.mrf.mxu0
    %v1845 = vadd.f32 %v1816, %v1844
    %1846 = vmatmul.f32.gmra.mxu0 %v1666
    %v1847 = vpop.f32.mrf.mxu0
    %v1848 = vadd.f32 %v1819, %v1847
    %1849 = vmatmul.f32.gmra.mxu0 %v1670
    %v1850 = vpop.f32.mrf.mxu0
    %v1851 = vadd.f32 %v1822, %v1850
    %1852 = vmatmul.f32.gmra.mxu0 %v1674
    %v1853 = vpop.f32.mrf.mxu0
    %v1854 = vadd.f32 %v1825, %v1853
    %1855 = vdwg.mxu0
    %v1856 = vadd.f32 %v1458, %v1845
    %v1857 = vadd.f32 %v1459, %v1848
    %v1858 = vadd.f32 %v1460, %v1851
    %v1859 = vadd.f32 %v1461, %v1854
    %1860 = vadd.xlane.f32.xlu0 %v1856
    %v1861 = vpop.xlane.xlu0 %1860
    %1862 = vadd.xlane.f32.xlu0 %v1857
    %v1863 = vpop.xlane.xlu0 %1862
    %1864 = vadd.xlane.f32.xlu0 %v1858
    %v1865 = vpop.xlane.xlu0 %1864
    %1866 = vadd.xlane.f32.xlu0 %v1859
    %v1867 = vpop.xlane.xlu0 %1866
    %v1868 = vmul.f32 %v1861, %v1379
    %v1869 = vmul.f32 %v1863, %v1379
    %v1870 = vmul.f32 %v1865, %v1379
    %v1871 = vmul.f32 %v1867, %v1379
    %v1872 = vsub.f32 %v1856, %v1868
    %v1873 = vsub.f32 %v1857, %v1869
    %v1874 = vsub.f32 %v1858, %v1870
    %v1875 = vsub.f32 %v1859, %v1871
    %v1876 = vmul.f32 %v1872, %v1872
    %v1877 = vmul.f32 %v1873, %v1873
    %v1878 = vmul.f32 %v1874, %v1874
    %v1879 = vmul.f32 %v1875, %v1875
    %1880 = vadd.xlane.f32.xlu0 %v1876
    %v1881 = vpop.xlane.xlu0 %1880
    %1882 = vadd.xlane.f32.xlu0 %v1877
    %v1883 = vpop.xlane.xlu0 %1882
    %1884 = vadd.xlane.f32.xlu0 %v1878
    %v1885 = vpop.xlane.xlu0 %1884
    %1886 = vadd.xlane.f32.xlu0 %v1879
    %v1887 = vpop.xlane.xlu0 %1886
    %v1888 = vmul.f32 %v1881, %v1379
    %v1889 = vmul.f32 %v1883, %v1379
    %v1890 = vmul.f32 %v1885, %v1379
    %v1891 = vmul.f32 %v1887, %v1379
    %v1892 = vadd.f32 %v1888, 1e-05
    %v1893 = vadd.f32 %v1889, 1e-05
    %v1894 = vadd.f32 %v1890, 1e-05
    %v1895 = vadd.f32 %v1891, 1e-05
    %v1896 = vrsqrt.pop %v1892
    %v1897 = vmul.f32 %v1896, %v1892
    %v1898 = vmul.f32 %v1897, %v1896
    %v1899 = vmul.f32 0.5, %v1898
    %v1900 = vsub.f32 1.5, %v1899
    %v1901 = vmul.f32 %v1896, %v1900
    %vm1902 = vweird.f32 %v1892
    %vm1903 = vweird.f32 %v1896
    %vm1904 = vmor %vm1902, %vm1903
    %v1905 = vsel %vm1904, %v1896, %v1901
    %v1906 = vrsqrt.pop %v1893
    %v1907 = vmul.f32 %v1906, %v1893
    %v1908 = vmul.f32 %v1907, %v1906
    %v1909 = vmul.f32 0.5, %v1908
    %v1910 = vsub.f32 1.5, %v1909
    %v1911 = vmul.f32 %v1906, %v1910
    %vm1912 = vweird.f32 %v1893
    %vm1913 = vweird.f32 %v1906
    %vm1914 = vmor %vm1912, %vm1913
    %v1915 = vsel %vm1914, %v1906, %v1911
    %v1916 = vrsqrt.pop %v1894
    %v1917 = vmul.f32 %v1916, %v1894
    %v1918 = vmul.f32 %v1917, %v1916
    %v1919 = vmul.f32 0.5, %v1918
    %v1920 = vsub.f32 1.5, %v1919
    %v1921 = vmul.f32 %v1916, %v1920
    %vm1922 = vweird.f32 %v1894
    %vm1923 = vweird.f32 %v1916
    %vm1924 = vmor %vm1922, %vm1923
    %v1925 = vsel %vm1924, %v1916, %v1921
    %v1926 = vrsqrt.pop %v1895
    %v1927 = vmul.f32 %v1926, %v1895
    %v1928 = vmul.f32 %v1927, %v1926
    %v1929 = vmul.f32 0.5, %v1928
    %v1930 = vsub.f32 1.5, %v1929
    %v1931 = vmul.f32 %v1926, %v1930
    %vm1932 = vweird.f32 %v1895
    %vm1933 = vweird.f32 %v1926
    %vm1934 = vmor %vm1932, %vm1933
    %v1935 = vsel %vm1934, %v1926, %v1931
    %v1936 = vmul.f32 %v1872, %v1905
    %v1937 = vmul.f32 %v1873, %v1915
    %v1938 = vmul.f32 %v1874, %v1925
    %v1939 = vmul.f32 %v1875, %v1935
    %v1940 = vperm.slane %v274, 4
    %v1941 = vmul.f32 %v1936, %v1940
    %v1942 = vmul.f32 %v1937, %v1940
    %v1943 = vmul.f32 %v1938, %v1940
    %v1944 = vmul.f32 %v1939, %v1940
    %v1945 = vperm.slane %v274, 5
    %v1946 = vadd.f32 %v1941, %v1945
    %v1947 = vadd.f32 %v1942, %v1945
    %v1948 = vadd.f32 %v1943, %v1945
    %v1949 = vadd.f32 %v1944, %v1945
    %1950 = vst [vmem:[#allocation14] sm:$0xff] %v1946
    %1951 = vst [vmem:[#allocation14 + $0x8] sm:$0xff] %v1947
    %1952 = vst [vmem:[#allocation14 + $0x10] sm:$0xff] %v1948
    %1953 = vst [vmem:[#allocation14 + $0x18] sm:$0xff] %v1949
    // Predicated region
    $region54: #{tpu_custom_call.1} parent=1 // pred_check
      _
    $region55: #{tpu_custom_call.1} parent=1 // pred_check_branch
      %1955 = sbr.rel (0) target = $region57
    $region56: #{tpu_custom_call.1} parent=1 // pred_region
      %1957 = vsyncadd [#allocation7], 0
      %s1958 = sshll.u32 [#allocation14], 4
      %s1959 = int_to_ptr.vmem [resolvable:$true] %s1958
      %s1960 = sshll.u32 %s8, 4
      %s1961 = int_to_ptr.hbm [resolvable:$true] %s1960
      %1966 = dma.vmem_to_hbm [thread:$0]  %s1959, 512, %s1961, [#allocation7], 128, 128, 8
    $region57: #{tpu_custom_call.1} parent=1 // pred_fallthru
      _
    // Predicated region
    $region58: #{tpu_custom_call.1} parent=1 // pred_check
      _
    $region59: #{tpu_custom_call.1} parent=1 // pred_check_branch
      %1968 = sbr.rel (0) target = $region61
    $region60: #{tpu_custom_call.1} parent=1 // pred_region
      %1970 = dma.done [#allocation7], 512
    $region61: #{tpu_custom_call.1} parent=1 // pred_fallthru
      _
    %1971 = vsyncpa [#allocation6], 1
    %1972 = vsyncpa [#allocation9], 1
    %1973 = vsyncpa [#allocation12], 1
    %1974 = vsyncpa [#allocation7], 1
  %1975 = vsyncmov [#allocation4]
  %s1976 = vpop.sfrf %1975
  %p1977 = scmp.eq.s32.totalorder %s1976, 0
  %p1978 = pneg %p1977
  %1980 = shalt.err (%p1978)
  %s1981 = scalar_lea.sflag [#allocation4], 1
  %1982 = vsyncmov %s1981
  %s1983 = vpop.sfrf %1982
  %p1984 = scmp.eq.s32.totalorder %s1983, 0
  %p1985 = pneg %p1984
  %1987 = shalt.err (%p1985)

</llo_original>
